<compile_context>
chip_gen: v5e
topology: v5e:2x2
jax: 0.10.0
libtpu: 0.0.40
codegen_flags: <defaults>
</compile_context>

<pallas_src>
import jax
import jax.numpy as jnp
import numpy as np
from jax.experimental import pallas as pl
from jax.experimental.pallas import tpu as pltpu

# ---- static model config (small shapes consistent with the module) ----
BATCH = 2
IN_CHANNELS = 4
IMG = 16
PATCH = 8
NP_H = IMG // PATCH
NP_W = IMG // PATCH
NUM_PATCHES = NP_H * NP_W                      # 4
PIX_PER_PATCH = PATCH * PATCH * IN_CHANNELS    # 256
DIM = 32
LAYERS = 2
HEADS = 4
DIM_HEAD = DIM // HEADS                        # 8
FF_MULT = 4
FF_DIM = DIM * FF_MULT                         # 128
SCALE = DIM_HEAD ** (-0.5)
EPS = 1e-5                                     # nn.LayerNorm default
TOKENS = BATCH * NUM_PATCHES                   # 8  (full 8-sublane tile)
HT = HEADS * TOKENS                            # 32 fused (head, batch, patch) rows
OUT_LANES = 128                                # lane-dense output slab width
NEG_INF = -1e30                                # cross-(head,batch) attention mask

# per-layer bf16 weight slab lane layout: [Wff1 | Wq | Wk | Wv@Wout per head]
W_QKV_OFF = FF_DIM                             # 128 (slice start is 128-aligned)
QKV_LANES = 2 * DIM + HEADS * DIM              # 192
SLAB_LANES = FF_DIM + QKV_LANES                # 320

# packed f32 vector-slab row layout
ROW_BIN = HT                                   # 32: patch-embed bias
ROW_BPAD = HT + 1                              # 33: final-LN bias (padded to 128)
ROW_L0 = HT + 2                                # 34: per-layer vectors start here
VEC_PER_LAYER = 7                              # ln1_g ln1_b bout ln2_g ln2_b bff2 bff1
VEC_ROWS = ROW_L0 + VEC_PER_LAYER * LAYERS     # 48


# ---------------------------- small math helpers ----------------------------
def _layer_norm(h, g, b):
    # one-pass variance: the two lane reductions are independent (review 7)
    mu = jnp.mean(h, axis=-1, keepdims=True)
    var = jnp.mean(h * h, axis=-1, keepdims=True) - mu * mu
    return (h - mu) * jax.lax.rsqrt(var + EPS) * g + b


def _gelu_exact(x):
    # PyTorch nn.GELU() default: exact erf formulation (kept in f32).
    return 0.5 * x * (1.0 + jax.lax.erf(x * (1.0 / np.sqrt(2.0))))


def _mm_w(a, w_bf16):
    # f32 activation x pre-packed bf16 weight, f32 accumulate (no weight cast)
    return jnp.dot(a.astype(jnp.bfloat16), w_bf16,
                   preferred_element_type=jnp.float32)


def _mm_aa(a, b):
    # activation x activation, NN contraction
    return jnp.dot(a.astype(jnp.bfloat16), b.astype(jnp.bfloat16),
                   preferred_element_type=jnp.float32)


def _mm_nt(a, b):
    # activation x activation, NT contraction (q @ k^T)
    return jax.lax.dot_general(
        a.astype(jnp.bfloat16), b.astype(jnp.bfloat16),
        dimension_numbers=(((1,), (1,)), ((), ())),
        preferred_element_type=jnp.float32)


# ------------------------------ kernel ------------------------------
def decoder_kernel(x_ref, w_in_ref, wlayer_ref, wff2_ref, vec_ref, out_ref):
    vec = vec_ref[...]                          # (48, 128) f32 packed vectors
    bias = vec[:HT, :HT]                        # (32, 32) fused head/batch ALiBi mask
    b_in = vec[ROW_BIN:ROW_BIN + 1, :DIM]       # (1, 32)
    b_pad = vec[ROW_BPAD:ROW_BPAD + 1, :]       # (1, 128)

    # patch embedding for the whole fused batch: (8, 256) @ (256, 32) + b_in
    x = _mm_w(x_ref[...], w_in_ref[...]) + b_in

    for l in range(LAYERS):                     # static unrolled layer loop
        wl = wlayer_ref[l]                      # (32, 320) bf16 weight slab
        r = ROW_L0 + VEC_PER_LAYER * l
        ln1_g, ln1_b = vec[r + 0:r + 1, :DIM], vec[r + 1:r + 2, :DIM]
        bout = vec[r + 2:r + 3, :DIM]
        ln2_g, ln2_b = vec[r + 3:r + 4, :DIM], vec[r + 4:r + 5, :DIM]
        bff2 = vec[r + 5:r + 6, :DIM]
        bff1 = vec[r + 6:r + 7, :]              # (1, 128)

        # -------------------- attention block --------------------
        h = _layer_norm(x, ln1_g, ln1_b)                         # (8, 32) f32
        # fused projection: [q | k | v@Wout (per head)] in ONE matmul
        qkv = _mm_w(h, wl[:, W_QKV_OFF:])                        # (8, 192) f32

        # sublane-stack the heads: rows become (head, batch, patch)
        q_s = jnp.concatenate(
            [qkv[:, g * DIM_HEAD:(g + 1) * DIM_HEAD] for g in range(HEADS)],
            axis=0)                                              # (32, 8)
        k_s = jnp.concatenate(
            [qkv[:, DIM + g * DIM_HEAD:DIM + (g + 1) * DIM_HEAD]
             for g in range(HEADS)], axis=0)                     # (32, 8)
        v_s = jnp.concatenate(
            [qkv[:, 2 * DIM + g * DIM:2 * DIM + (g + 1) * DIM]
             for g in range(HEADS)], axis=0)                     # (32, 32)

        # one score matmul for all heads & batch; cross-(head,batch) pairs get
        # -1e30 from the precomputed block-diagonal bias (every row keeps
        # NUM_PATCHES valid entries, so the softmax denominator is never 0).
        s = _mm_nt(q_s, k_s) * SCALE + bias                      # (32, 32) f32
        m = jnp.max(s, axis=-1, keepdims=True)
        e = jnp.exp(s - m)
        attn = e * pl.reciprocal(jnp.sum(e, axis=-1, keepdims=True),
                                 approx=True)                    # softmax f32

        # attn @ (v.Wout): per-head output contributions, stacked in sublanes
        o_s = _mm_aa(attn, v_s)                                  # (32, 32) f32
        o = o_s[0:TOKENS, :]
        for g in range(1, HEADS):               # head reduction == out-proj sum
            o = o + o_s[g * TOKENS:(g + 1) * TOKENS, :]
        x = x + o + bout                                          # residual

        # ------------------------ FFN block ------------------------
        h2 = _layer_norm(x, ln2_g, ln2_b)
        ff = _mm_w(h2, wl[:, :FF_DIM]) + bff1                    # (8, 128)
        ff = _gelu_exact(ff)
        ff = _mm_w(ff, wff2_ref[l]) + bff2                       # (8, 32), NN
        x = x + ff                                                # residual

    # final LayerNorm; affine folded into a lane-dense pad matmul
    mu = jnp.mean(x, axis=-1, keepdims=True)
    var = jnp.mean(x * x, axis=-1, keepdims=True) - mu * mu
    x_hat = (x - mu) * jax.lax.rsqrt(var + EPS)                  # (8, 32)
    g_pad = wlayer_ref[LAYERS][:, :OUT_LANES]                    # (32, 128) bf16
    out_ref[...] = _mm_w(x_hat, g_pad) + b_pad                   # (8, 128)


# ------------------------------ host-side glue ------------------------------
def patchify(imgs):
    # einops 'b c (h i) (w j) -> b (h w) (c i j)'
    B, C, H, W = imgs.shape
    x = imgs.reshape(B, C, NP_H, PATCH, NP_W, PATCH)    # b c h i w j
    x = x.transpose(0, 2, 4, 1, 3, 5)                   # b h w c i j
    return x.reshape(B, NP_H * NP_W, C * PATCH * PATCH)


def pack_params(p, alibi):
    """Pack parameters + ALiBi into 4 lane-dense slabs (bf16 weights, f32 vecs)."""
    wlayer = np.zeros((LAYERS + 1, DIM, SLAB_LANES), np.float32)
    wff2 = np.zeros((LAYERS, FF_DIM, DIM), np.float32)
    vec = np.zeros((VEC_ROWS, OUT_LANES), np.float32)

    for l in range(LAYERS):
        wqkv = np.asarray(p["wqkv"][l])                           # (32, 96)
        wout = np.asarray(p["wout"][l])                           # (32, 32)
        wlayer[l, :, :FF_DIM] = np.asarray(p["wff1"][l])          # Wff1
        wlayer[l, :, W_QKV_OFF:W_QKV_OFF + DIM] = wqkv[:, 0:DIM]          # Wq
        wlayer[l, :, W_QKV_OFF + DIM:W_QKV_OFF + 2 * DIM] = wqkv[:, DIM:2 * DIM]  # Wk
        for g in range(HEADS):                                    # fold Wv_h @ Wout_h
            wv_g = wqkv[:, 2 * DIM + g * DIM_HEAD:2 * DIM + (g + 1) * DIM_HEAD]
            wo_g = wout[g * DIM_HEAD:(g + 1) * DIM_HEAD, :]
            off = W_QKV_OFF + 2 * DIM + g * DIM
            wlayer[l, :, off:off + DIM] = wv_g @ wo_g
        wff2[l] = np.asarray(p["wff2"][l])                        # un-transposed

        r = ROW_L0 + VEC_PER_LAYER * l
        vec[r + 0, :DIM] = np.asarray(p["ln1_g"][l])
        vec[r + 1, :DIM] = np.asarray(p["ln1_b"][l])
        vec[r + 2, :DIM] = np.asarray(p["bout"][l])
        vec[r + 3, :DIM] = np.asarray(p["ln2_g"][l])
        vec[r + 4, :DIM] = np.asarray(p["ln2_b"][l])
        vec[r + 5, :DIM] = np.asarray(p["bff2"][l])
        vec[r + 6, :] = np.asarray(p["bff1"][l])

    # final-LN affine folded into a (32, 128) pad matmul (extra wlayer slot)
    wlayer[LAYERS, :, :DIM] = np.diag(np.asarray(p["lnf_g"])[0])
    vec[ROW_BIN, :DIM] = np.asarray(p["b_in"])[0]
    vec[ROW_BPAD, :DIM] = np.asarray(p["lnf_b"])[0]

    # fused (head, batch)-block-diagonal ALiBi on the 32x32 score matrix
    al = np.asarray(alibi)
    bias = np.full((HT, HT), NEG_INF, np.float32)
    for h in range(HEADS):
        for b in range(BATCH):
            r0 = h * TOKENS + b * NUM_PATCHES
            bias[r0:r0 + NUM_PATCHES, r0:r0 + NUM_PATCHES] = al[h]
    vec[:HT, :HT] = bias

    w_in = np.asarray(p["w_in"], np.float32)
    return (jnp.asarray(w_in, jnp.bfloat16),
            jnp.asarray(wlayer, jnp.bfloat16),
            jnp.asarray(wff2, jnp.bfloat16),
            jnp.asarray(vec, jnp.float32))


def decoder_forward(imgs, attn_bias, params):
    # All B*N tokens fused into one (8, 256) tile -> single grid step.
    x = patchify(imgs).reshape(TOKENS, PIX_PER_PATCH).astype(jnp.float32)
    packed = pack_params(params, attn_bias)
    inputs = (x,) + packed

    def full_spec(a):
        nd = a.ndim
        return pl.BlockSpec(a.shape, lambda i, _nd=nd: (0,) * _nd)

    out = pl.pallas_call(
        decoder_kernel,
        out_shape=jax.ShapeDtypeStruct((TOKENS, OUT_LANES), jnp.float32),
        grid_spec=pltpu.PrefetchScalarGridSpec(
            num_scalar_prefetch=0,
            grid=(1,),                                   # whole batch, one step
            in_specs=[full_spec(a) for a in inputs],
            out_specs=pl.BlockSpec((TOKENS, OUT_LANES), lambda i: (0, 0)),
        ),
        compiler_params=pltpu.CompilerParams(
            dimension_semantics=("arbitrary",)),
    )(*inputs)
    # un-pad the lane-dense (8, 128) slab back to (B, N, DIM)
    return out[:, :DIM].reshape(BATCH, NUM_PATCHES, DIM)


# ------------------------- params & pure-JAX reference -------------------------
def init_params(key):
    ks = jax.random.split(key, 9)

    def w(k, shape, fan_in):
        return jax.random.normal(k, shape, jnp.float32) / np.sqrt(fan_in)

    return {
        "w_in": w(ks[0], (PIX_PER_PATCH, DIM), PIX_PER_PATCH),
        "b_in": 0.01 * jax.random.normal(ks[1], (1, DIM), jnp.float32),
        "ln1_g": jnp.ones((LAYERS, DIM), jnp.float32),
        "ln1_b": jnp.zeros((LAYERS, DIM), jnp.float32),
        "wqkv": w(ks[2], (LAYERS, DIM, 3 * DIM), DIM),
        "wout": w(ks[3], (LAYERS, DIM, DIM), DIM),
        "bout": 0.01 * jax.random.normal(ks[4], (LAYERS, DIM), jnp.float32),
        "ln2_g": jnp.ones((LAYERS, DIM), jnp.float32),
        "ln2_b": jnp.zeros((LAYERS, DIM), jnp.float32),
        "wff1": w(ks[5], (LAYERS, DIM, FF_DIM), DIM),
        "bff1": 0.01 * jax.random.normal(ks[6], (LAYERS, FF_DIM), jnp.float32),
        "wff2": w(ks[7], (LAYERS, FF_DIM, DIM), FF_DIM),
        "bff2": 0.01 * jax.random.normal(ks[8], (LAYERS, DIM), jnp.float32),
        "lnf_g": jnp.ones((1, DIM), jnp.float32),
        "lnf_b": jnp.zeros((1, DIM), jnp.float32),
    }


def decoder_reference(imgs, alibi, p):
    x = patchify(imgs).astype(jnp.float32)
    x = jnp.matmul(x, p["w_in"]) + p["b_in"]
    B = x.shape[0]
    for l in range(LAYERS):
        h = _layer_norm(x, p["ln1_g"][l], p["ln1_b"][l])
        qkv = jnp.matmul(h, p["wqkv"][l])
        q, k, v = jnp.split(qkv, 3, axis=-1)

        def heads(t):
            return t.reshape(B, NUM_PATCHES, HEADS, DIM_HEAD).transpose(0, 2, 1, 3)

        q, k, v = heads(q), heads(k), heads(v)
        scores = jnp.einsum("bhid,bhjd->bhij", q, k) * SCALE
        scores = scores + alibi[None]
        attn = jax.nn.softmax(scores, axis=-1)
        o = jnp.einsum("bhij,bhjd->bhid", attn, v)
        o = o.transpose(0, 2, 1, 3).reshape(B, NUM_PATCHES, DIM)
        x = x + jnp.matmul(o, p["wout"][l]) + p["bout"][l]

        h2 = _layer_norm(x, p["ln2_g"][l], p["ln2_b"][l])
        ff = jnp.matmul(h2, p["wff1"][l]) + p["bff1"][l]
        ff = _gelu_exact(ff)
        ff = jnp.matmul(ff, p["wff2"][l]) + p["bff2"][l]
        x = x + ff
    return _layer_norm(x, p["lnf_g"], p["lnf_b"])


# ------------------------------ main ------------------------------
if __name__ == "__main__":
    key = jax.random.PRNGKey(0)
    k_img, k_alibi, k_param = jax.random.split(key, 3)

    imgs = jax.random.normal(k_img, (BATCH, IN_CHANNELS, IMG, IMG), jnp.float32)
    # ALiBi-style bias, broadcast over batch: (heads, n, n)
    attn_bias = 0.1 * jax.random.normal(
        k_alibi, (HEADS, NUM_PATCHES, NUM_PATCHES), jnp.float32)
    params = init_params(k_param)

    out = decoder_forward(imgs, attn_bias, params)
    out = jax.block_until_ready(out)

    ref = decoder_reference(imgs, attn_bias, params)
    assert out.shape == (BATCH, NUM_PATCHES, DIM)
    np.testing.assert_allclose(np.asarray(out), np.asarray(ref),
                               atol=5e-2, rtol=5e-2)
    print("KERNEL_OK")
</pallas_src>

<mosaic_0001>
module attributes {stable_mosaic.version = 11 : i64} {
  func.func @decoder_kernel(%arg0: i32, %arg1: memref<8x256xf32, #tpu.memory_space<vmem>>, %arg2: memref<256x32xbf16, #tpu.memory_space<vmem>>, %arg3: memref<3x32x320xbf16, #tpu.memory_space<vmem>>, %arg4: memref<2x128x32xbf16, #tpu.memory_space<vmem>>, %arg5: memref<48x128xf32, #tpu.memory_space<vmem>>, %arg6: memref<8x128xf32, #tpu.memory_space<vmem>>) attributes {dimension_semantics = [#tpu.dimension_semantics<arbitrary>], iteration_bounds = array<i64: 1>, scalar_prefetch = 0 : i64, scratch_operands = 0 : i64, tpu.core_type = #tpu.core_type<tc>, window_params = [{pipeline_mode = #tpu.pipeline_mode<synchronous>, transform_indices = @transform_0, window_bounds = array<i64: 8, 256>}, {pipeline_mode = #tpu.pipeline_mode<synchronous>, transform_indices = @transform_1, window_bounds = array<i64: 256, 32>}, {pipeline_mode = #tpu.pipeline_mode<synchronous>, transform_indices = @transform_2, window_bounds = array<i64: 3, 32, 320>}, {pipeline_mode = #tpu.pipeline_mode<synchronous>, transform_indices = @transform_3, window_bounds = array<i64: 2, 128, 32>}, {pipeline_mode = #tpu.pipeline_mode<synchronous>, transform_indices = @transform_4, window_bounds = array<i64: 48, 128>}, {pipeline_mode = #tpu.pipeline_mode<synchronous>, transform_indices = @transform_5, window_bounds = array<i64: 8, 128>}]} {
    %c0 = arith.constant 0 : index
    %c0_0 = arith.constant 0 : index
    %0 = vector.load %arg5[%c0, %c0_0] : memref<48x128xf32, #tpu.memory_space<vmem>>, vector<48x128xf32>
    %1 = vector.extract_strided_slice %0 {offsets = [0, 0], sizes = [32, 32], strides = [1, 1]} : vector<48x128xf32> to vector<32x32xf32>
    %2 = vector.extract_strided_slice %0 {offsets = [32, 0], sizes = [1, 32], strides = [1, 1]} : vector<48x128xf32> to vector<1x32xf32>
    %3 = vector.extract_strided_slice %0 {offsets = [33, 0], sizes = [1, 128], strides = [1, 1]} : vector<48x128xf32> to vector<1x128xf32>
    %c0_1 = arith.constant 0 : index
    %c0_2 = arith.constant 0 : index
    %4 = vector.load %arg1[%c0_1, %c0_2] : memref<8x256xf32, #tpu.memory_space<vmem>>, vector<8x256xf32>
    %c0_3 = arith.constant 0 : index
    %c0_4 = arith.constant 0 : index
    %5 = vector.load %arg2[%c0_3, %c0_4] : memref<256x32xbf16, #tpu.memory_space<vmem>>, vector<256x32xbf16>
    %6 = arith.truncf %4 : vector<8x256xf32> to vector<8x256xbf16>
    %cst = arith.constant dense<0.000000e+00> : vector<8x32xf32>
    %7 = tpu.matmul %6, %5, %cst {dimension_numbers = #tpu.dot_dimension_numbers<[1], [0], [0], [1], [0, 0, 1, 1], [], []>} : vector<8x256xbf16>, vector<256x32xbf16>, vector<8x32xf32> -> vector<8x32xf32>
    %8 = vector.broadcast %2 : vector<1x32xf32> to vector<8x32xf32>
    %9 = arith.addf %7, %8 : vector<8x32xf32>
    %c0_5 = arith.constant 0 : index
    %c0_6 = arith.constant 0 : index
    %c0_7 = arith.constant 0 : index
    %10 = vector.load %arg3[%c0_5, %c0_6, %c0_7] : memref<3x32x320xbf16, #tpu.memory_space<vmem>>, vector<1x32x320xbf16>
    %11 = vector.shape_cast %10 : vector<1x32x320xbf16> to vector<32x320xbf16>
    %12 = vector.extract_strided_slice %0 {offsets = [34, 0], sizes = [1, 32], strides = [1, 1]} : vector<48x128xf32> to vector<1x32xf32>
    %13 = vector.extract_strided_slice %0 {offsets = [35, 0], sizes = [1, 32], strides = [1, 1]} : vector<48x128xf32> to vector<1x32xf32>
    %14 = vector.extract_strided_slice %0 {offsets = [36, 0], sizes = [1, 32], strides = [1, 1]} : vector<48x128xf32> to vector<1x32xf32>
    %15 = vector.extract_strided_slice %0 {offsets = [37, 0], sizes = [1, 32], strides = [1, 1]} : vector<48x128xf32> to vector<1x32xf32>
    %16 = vector.extract_strided_slice %0 {offsets = [38, 0], sizes = [1, 32], strides = [1, 1]} : vector<48x128xf32> to vector<1x32xf32>
    %17 = vector.extract_strided_slice %0 {offsets = [39, 0], sizes = [1, 32], strides = [1, 1]} : vector<48x128xf32> to vector<1x32xf32>
    %18 = vector.extract_strided_slice %0 {offsets = [40, 0], sizes = [1, 128], strides = [1, 1]} : vector<48x128xf32> to vector<1x128xf32>
    %cst_8 = arith.constant dense<0.000000e+00> : vector<8xf32>
    %19 = vector.multi_reduction <add>, %9, %cst_8 [1] : vector<8x32xf32> to vector<8xf32>
    %20 = vector.shape_cast %19 : vector<8xf32> to vector<8x1xf32>
    %cst_9 = arith.constant 3.200000e+01 : f32
    %21 = vector.broadcast %cst_9 : f32 to vector<8x1xf32>
    %22 = arith.divf %20, %21 : vector<8x1xf32>
    %23 = arith.mulf %9, %9 : vector<8x32xf32>
    %cst_10 = arith.constant dense<0.000000e+00> : vector<8xf32>
    %24 = vector.multi_reduction <add>, %23, %cst_10 [1] : vector<8x32xf32> to vector<8xf32>
    %25 = vector.shape_cast %24 : vector<8xf32> to vector<8x1xf32>
    %cst_11 = arith.constant 3.200000e+01 : f32
    %26 = vector.broadcast %cst_11 : f32 to vector<8x1xf32>
    %27 = arith.divf %25, %26 : vector<8x1xf32>
    %28 = arith.mulf %22, %22 : vector<8x1xf32>
    %29 = arith.subf %27, %28 : vector<8x1xf32>
    %30 = vector.broadcast %22 : vector<8x1xf32> to vector<8x32xf32>
    %31 = arith.subf %9, %30 : vector<8x32xf32>
    %cst_12 = arith.constant 9.99999974E-6 : f32
    %32 = vector.broadcast %cst_12 : f32 to vector<8x1xf32>
    %33 = arith.addf %29, %32 : vector<8x1xf32>
    %34 = math.rsqrt %33 : vector<8x1xf32>
    %35 = vector.broadcast %34 : vector<8x1xf32> to vector<8x32xf32>
    %36 = arith.mulf %31, %35 : vector<8x32xf32>
    %37 = vector.broadcast %12 : vector<1x32xf32> to vector<8x32xf32>
    %38 = arith.mulf %36, %37 : vector<8x32xf32>
    %39 = vector.broadcast %13 : vector<1x32xf32> to vector<8x32xf32>
    %40 = arith.addf %38, %39 : vector<8x32xf32>
    %41 = vector.extract_strided_slice %11 {offsets = [0, 128], sizes = [32, 192], strides = [1, 1]} : vector<32x320xbf16> to vector<32x192xbf16>
    %42 = arith.truncf %40 : vector<8x32xf32> to vector<8x32xbf16>
    %cst_13 = arith.constant dense<0.000000e+00> : vector<8x192xf32>
    %43 = tpu.matmul %42, %41, %cst_13 {dimension_numbers = #tpu.dot_dimension_numbers<[1], [0], [0], [1], [0, 0, 1, 1], [], []>} : vector<8x32xbf16>, vector<32x192xbf16>, vector<8x192xf32> -> vector<8x192xf32>
    %44 = vector.extract_strided_slice %43 {offsets = [0, 0], sizes = [8, 8], strides = [1, 1]} : vector<8x192xf32> to vector<8x8xf32>
    %45 = vector.extract_strided_slice %43 {offsets = [0, 8], sizes = [8, 8], strides = [1, 1]} : vector<8x192xf32> to vector<8x8xf32>
    %46 = vector.extract_strided_slice %43 {offsets = [0, 16], sizes = [8, 8], strides = [1, 1]} : vector<8x192xf32> to vector<8x8xf32>
    %47 = vector.extract_strided_slice %43 {offsets = [0, 24], sizes = [8, 8], strides = [1, 1]} : vector<8x192xf32> to vector<8x8xf32>
    %48 = tpu.concatenate %44, %45, %46, %47 in 0 : vector<8x8xf32>, vector<8x8xf32>, vector<8x8xf32>, vector<8x8xf32> -> vector<32x8xf32>
    %49 = vector.extract_strided_slice %43 {offsets = [0, 32], sizes = [8, 8], strides = [1, 1]} : vector<8x192xf32> to vector<8x8xf32>
    %50 = vector.extract_strided_slice %43 {offsets = [0, 40], sizes = [8, 8], strides = [1, 1]} : vector<8x192xf32> to vector<8x8xf32>
    %51 = vector.extract_strided_slice %43 {offsets = [0, 48], sizes = [8, 8], strides = [1, 1]} : vector<8x192xf32> to vector<8x8xf32>
    %52 = vector.extract_strided_slice %43 {offsets = [0, 56], sizes = [8, 8], strides = [1, 1]} : vector<8x192xf32> to vector<8x8xf32>
    %53 = tpu.concatenate %49, %50, %51, %52 in 0 : vector<8x8xf32>, vector<8x8xf32>, vector<8x8xf32>, vector<8x8xf32> -> vector<32x8xf32>
    %54 = vector.extract_strided_slice %43 {offsets = [0, 64], sizes = [8, 32], strides = [1, 1]} : vector<8x192xf32> to vector<8x32xf32>
    %55 = vector.extract_strided_slice %43 {offsets = [0, 96], sizes = [8, 32], strides = [1, 1]} : vector<8x192xf32> to vector<8x32xf32>
    %56 = vector.extract_strided_slice %43 {offsets = [0, 128], sizes = [8, 32], strides = [1, 1]} : vector<8x192xf32> to vector<8x32xf32>
    %57 = vector.extract_strided_slice %43 {offsets = [0, 160], sizes = [8, 32], strides = [1, 1]} : vector<8x192xf32> to vector<8x32xf32>
    %58 = tpu.concatenate %54, %55, %56, %57 in 0 : vector<8x32xf32>, vector<8x32xf32>, vector<8x32xf32>, vector<8x32xf32> -> vector<32x32xf32>
    %59 = arith.truncf %48 : vector<32x8xf32> to vector<32x8xbf16>
    %60 = arith.truncf %53 : vector<32x8xf32> to vector<32x8xbf16>
    %cst_14 = arith.constant dense<0.000000e+00> : vector<32x32xf32>
    %61 = tpu.matmul %59, %60, %cst_14 {dimension_numbers = #tpu.dot_dimension_numbers<[1], [1], [0], [0], [0, 0, 1, 0], [], []>} : vector<32x8xbf16>, vector<32x8xbf16>, vector<32x32xf32> -> vector<32x32xf32>
    %cst_15 = arith.constant 0.353553385 : f32
    %62 = vector.broadcast %cst_15 : f32 to vector<32x32xf32>
    %63 = arith.mulf %61, %62 : vector<32x32xf32>
    %64 = arith.addf %63, %1 : vector<32x32xf32>
    %cst_16 = arith.constant dense<0xFF800000> : vector<32xf32>
    %65 = vector.multi_reduction <maximumf>, %64, %cst_16 [1] : vector<32x32xf32> to vector<32xf32>
    %66 = vector.shape_cast %65 : vector<32xf32> to vector<32x1xf32>
    %67 = vector.broadcast %66 : vector<32x1xf32> to vector<32x32xf32>
    %68 = arith.subf %64, %67 : vector<32x32xf32>
    %69 = math.exp %68 : vector<32x32xf32>
    %cst_17 = arith.constant dense<0.000000e+00> : vector<32xf32>
    %70 = vector.multi_reduction <add>, %69, %cst_17 [1] : vector<32x32xf32> to vector<32xf32>
    %71 = vector.shape_cast %70 : vector<32xf32> to vector<32x1xf32>
    %72 = tpu.reciprocal %71 {approx = true} : vector<32x1xf32> -> vector<32x1xf32>
    %73 = vector.broadcast %72 : vector<32x1xf32> to vector<32x32xf32>
    %74 = arith.mulf %69, %73 : vector<32x32xf32>
    %75 = arith.truncf %74 : vector<32x32xf32> to vector<32x32xbf16>
    %76 = arith.truncf %58 : vector<32x32xf32> to vector<32x32xbf16>
    %cst_18 = arith.constant dense<0.000000e+00> : vector<32x32xf32>
    %77 = tpu.matmul %75, %76, %cst_18 {dimension_numbers = #tpu.dot_dimension_numbers<[1], [0], [0], [1], [0, 0, 1, 1], [], []>} : vector<32x32xbf16>, vector<32x32xbf16>, vector<32x32xf32> -> vector<32x32xf32>
    %78 = vector.extract_strided_slice %77 {offsets = [0, 0], sizes = [8, 32], strides = [1, 1]} : vector<32x32xf32> to vector<8x32xf32>
    %79 = vector.extract_strided_slice %77 {offsets = [8, 0], sizes = [8, 32], strides = [1, 1]} : vector<32x32xf32> to vector<8x32xf32>
    %80 = arith.addf %78, %79 : vector<8x32xf32>
    %81 = vector.extract_strided_slice %77 {offsets = [16, 0], sizes = [8, 32], strides = [1, 1]} : vector<32x32xf32> to vector<8x32xf32>
    %82 = arith.addf %80, %81 : vector<8x32xf32>
    %83 = vector.extract_strided_slice %77 {offsets = [24, 0], sizes = [8, 32], strides = [1, 1]} : vector<32x32xf32> to vector<8x32xf32>
    %84 = arith.addf %82, %83 : vector<8x32xf32>
    %85 = arith.addf %9, %84 : vector<8x32xf32>
    %86 = vector.broadcast %14 : vector<1x32xf32> to vector<8x32xf32>
    %87 = arith.addf %85, %86 : vector<8x32xf32>
    %cst_19 = arith.constant dense<0.000000e+00> : vector<8xf32>
    %88 = vector.multi_reduction <add>, %87, %cst_19 [1] : vector<8x32xf32> to vector<8xf32>
    %89 = vector.shape_cast %88 : vector<8xf32> to vector<8x1xf32>
    %cst_20 = arith.constant 3.200000e+01 : f32
    %90 = vector.broadcast %cst_20 : f32 to vector<8x1xf32>
    %91 = arith.divf %89, %90 : vector<8x1xf32>
    %92 = arith.mulf %87, %87 : vector<8x32xf32>
    %cst_21 = arith.constant dense<0.000000e+00> : vector<8xf32>
    %93 = vector.multi_reduction <add>, %92, %cst_21 [1] : vector<8x32xf32> to vector<8xf32>
    %94 = vector.shape_cast %93 : vector<8xf32> to vector<8x1xf32>
    %cst_22 = arith.constant 3.200000e+01 : f32
    %95 = vector.broadcast %cst_22 : f32 to vector<8x1xf32>
    %96 = arith.divf %94, %95 : vector<8x1xf32>
    %97 = arith.mulf %91, %91 : vector<8x1xf32>
    %98 = arith.subf %96, %97 : vector<8x1xf32>
    %99 = vector.broadcast %91 : vector<8x1xf32> to vector<8x32xf32>
    %100 = arith.subf %87, %99 : vector<8x32xf32>
    %cst_23 = arith.constant 9.99999974E-6 : f32
    %101 = vector.broadcast %cst_23 : f32 to vector<8x1xf32>
    %102 = arith.addf %98, %101 : vector<8x1xf32>
    %103 = math.rsqrt %102 : vector<8x1xf32>
    %104 = vector.broadcast %103 : vector<8x1xf32> to vector<8x32xf32>
    %105 = arith.mulf %100, %104 : vector<8x32xf32>
    %106 = vector.broadcast %15 : vector<1x32xf32> to vector<8x32xf32>
    %107 = arith.mulf %105, %106 : vector<8x32xf32>
    %108 = vector.broadcast %16 : vector<1x32xf32> to vector<8x32xf32>
    %109 = arith.addf %107, %108 : vector<8x32xf32>
    %110 = vector.extract_strided_slice %11 {offsets = [0, 0], sizes = [32, 128], strides = [1, 1]} : vector<32x320xbf16> to vector<32x128xbf16>
    %111 = arith.truncf %109 : vector<8x32xf32> to vector<8x32xbf16>
    %cst_24 = arith.constant dense<0.000000e+00> : vector<8x128xf32>
    %112 = tpu.matmul %111, %110, %cst_24 {dimension_numbers = #tpu.dot_dimension_numbers<[1], [0], [0], [1], [0, 0, 1, 1], [], []>} : vector<8x32xbf16>, vector<32x128xbf16>, vector<8x128xf32> -> vector<8x128xf32>
    %113 = vector.broadcast %18 : vector<1x128xf32> to vector<8x128xf32>
    %114 = arith.addf %112, %113 : vector<8x128xf32>
    %cst_25 = arith.constant 5.000000e-01 : f32
    %115 = vector.broadcast %cst_25 : f32 to vector<8x128xf32>
    %116 = arith.mulf %115, %114 : vector<8x128xf32>
    %cst_26 = arith.constant 0.707106769 : f32
    %117 = vector.broadcast %cst_26 : f32 to vector<8x128xf32>
    %118 = arith.mulf %114, %117 : vector<8x128xf32>
    %119 = math.erf %118 : vector<8x128xf32>
    %cst_27 = arith.constant 1.000000e+00 : f32
    %120 = vector.broadcast %cst_27 : f32 to vector<8x128xf32>
    %121 = arith.addf %120, %119 : vector<8x128xf32>
    %122 = arith.mulf %116, %121 : vector<8x128xf32>
    %c0_28 = arith.constant 0 : index
    %c0_29 = arith.constant 0 : index
    %c0_30 = arith.constant 0 : index
    %123 = vector.load %arg4[%c0_28, %c0_29, %c0_30] : memref<2x128x32xbf16, #tpu.memory_space<vmem>>, vector<1x128x32xbf16>
    %124 = vector.shape_cast %123 : vector<1x128x32xbf16> to vector<128x32xbf16>
    %125 = arith.truncf %122 : vector<8x128xf32> to vector<8x128xbf16>
    %cst_31 = arith.constant dense<0.000000e+00> : vector<8x32xf32>
    %126 = tpu.matmul %125, %124, %cst_31 {dimension_numbers = #tpu.dot_dimension_numbers<[1], [0], [0], [1], [0, 0, 1, 1], [], []>} : vector<8x128xbf16>, vector<128x32xbf16>, vector<8x32xf32> -> vector<8x32xf32>
    %127 = vector.broadcast %17 : vector<1x32xf32> to vector<8x32xf32>
    %128 = arith.addf %126, %127 : vector<8x32xf32>
    %129 = arith.addf %87, %128 : vector<8x32xf32>
    %c1 = arith.constant 1 : index
    %c0_32 = arith.constant 0 : index
    %c0_33 = arith.constant 0 : index
    %130 = vector.load %arg3[%c1, %c0_32, %c0_33] : memref<3x32x320xbf16, #tpu.memory_space<vmem>>, vector<1x32x320xbf16>
    %131 = vector.shape_cast %130 : vector<1x32x320xbf16> to vector<32x320xbf16>
    %132 = vector.extract_strided_slice %0 {offsets = [41, 0], sizes = [1, 32], strides = [1, 1]} : vector<48x128xf32> to vector<1x32xf32>
    %133 = vector.extract_strided_slice %0 {offsets = [42, 0], sizes = [1, 32], strides = [1, 1]} : vector<48x128xf32> to vector<1x32xf32>
    %134 = vector.extract_strided_slice %0 {offsets = [43, 0], sizes = [1, 32], strides = [1, 1]} : vector<48x128xf32> to vector<1x32xf32>
    %135 = vector.extract_strided_slice %0 {offsets = [44, 0], sizes = [1, 32], strides = [1, 1]} : vector<48x128xf32> to vector<1x32xf32>
    %136 = vector.extract_strided_slice %0 {offsets = [45, 0], sizes = [1, 32], strides = [1, 1]} : vector<48x128xf32> to vector<1x32xf32>
    %137 = vector.extract_strided_slice %0 {offsets = [46, 0], sizes = [1, 32], strides = [1, 1]} : vector<48x128xf32> to vector<1x32xf32>
    %138 = vector.extract_strided_slice %0 {offsets = [47, 0], sizes = [1, 128], strides = [1, 1]} : vector<48x128xf32> to vector<1x128xf32>
    %cst_34 = arith.constant dense<0.000000e+00> : vector<8xf32>
    %139 = vector.multi_reduction <add>, %129, %cst_34 [1] : vector<8x32xf32> to vector<8xf32>
    %140 = vector.shape_cast %139 : vector<8xf32> to vector<8x1xf32>
    %cst_35 = arith.constant 3.200000e+01 : f32
    %141 = vector.broadcast %cst_35 : f32 to vector<8x1xf32>
    %142 = arith.divf %140, %141 : vector<8x1xf32>
    %143 = arith.mulf %129, %129 : vector<8x32xf32>
    %cst_36 = arith.constant dense<0.000000e+00> : vector<8xf32>
    %144 = vector.multi_reduction <add>, %143, %cst_36 [1] : vector<8x32xf32> to vector<8xf32>
    %145 = vector.shape_cast %144 : vector<8xf32> to vector<8x1xf32>
    %cst_37 = arith.constant 3.200000e+01 : f32
    %146 = vector.broadcast %cst_37 : f32 to vector<8x1xf32>
    %147 = arith.divf %145, %146 : vector<8x1xf32>
    %148 = arith.mulf %142, %142 : vector<8x1xf32>
    %149 = arith.subf %147, %148 : vector<8x1xf32>
    %150 = vector.broadcast %142 : vector<8x1xf32> to vector<8x32xf32>
    %151 = arith.subf %129, %150 : vector<8x32xf32>
    %cst_38 = arith.constant 9.99999974E-6 : f32
    %152 = vector.broadcast %cst_38 : f32 to vector<8x1xf32>
    %153 = arith.addf %149, %152 : vector<8x1xf32>
    %154 = math.rsqrt %153 : vector<8x1xf32>
    %155 = vector.broadcast %154 : vector<8x1xf32> to vector<8x32xf32>
    %156 = arith.mulf %151, %155 : vector<8x32xf32>
    %157 = vector.broadcast %132 : vector<1x32xf32> to vector<8x32xf32>
    %158 = arith.mulf %156, %157 : vector<8x32xf32>
    %159 = vector.broadcast %133 : vector<1x32xf32> to vector<8x32xf32>
    %160 = arith.addf %158, %159 : vector<8x32xf32>
    %161 = vector.extract_strided_slice %131 {offsets = [0, 128], sizes = [32, 192], strides = [1, 1]} : vector<32x320xbf16> to vector<32x192xbf16>
    %162 = arith.truncf %160 : vector<8x32xf32> to vector<8x32xbf16>
    %cst_39 = arith.constant dense<0.000000e+00> : vector<8x192xf32>
    %163 = tpu.matmul %162, %161, %cst_39 {dimension_numbers = #tpu.dot_dimension_numbers<[1], [0], [0], [1], [0, 0, 1, 1], [], []>} : vector<8x32xbf16>, vector<32x192xbf16>, vector<8x192xf32> -> vector<8x192xf32>
    %164 = vector.extract_strided_slice %163 {offsets = [0, 0], sizes = [8, 8], strides = [1, 1]} : vector<8x192xf32> to vector<8x8xf32>
    %165 = vector.extract_strided_slice %163 {offsets = [0, 8], sizes = [8, 8], strides = [1, 1]} : vector<8x192xf32> to vector<8x8xf32>
    %166 = vector.extract_strided_slice %163 {offsets = [0, 16], sizes = [8, 8], strides = [1, 1]} : vector<8x192xf32> to vector<8x8xf32>
    %167 = vector.extract_strided_slice %163 {offsets = [0, 24], sizes = [8, 8], strides = [1, 1]} : vector<8x192xf32> to vector<8x8xf32>
    %168 = tpu.concatenate %164, %165, %166, %167 in 0 : vector<8x8xf32>, vector<8x8xf32>, vector<8x8xf32>, vector<8x8xf32> -> vector<32x8xf32>
    %169 = vector.extract_strided_slice %163 {offsets = [0, 32], sizes = [8, 8], strides = [1, 1]} : vector<8x192xf32> to vector<8x8xf32>
    %170 = vector.extract_strided_slice %163 {offsets = [0, 40], sizes = [8, 8], strides = [1, 1]} : vector<8x192xf32> to vector<8x8xf32>
    %171 = vector.extract_strided_slice %163 {offsets = [0, 48], sizes = [8, 8], strides = [1, 1]} : vector<8x192xf32> to vector<8x8xf32>
    %172 = vector.extract_strided_slice %163 {offsets = [0, 56], sizes = [8, 8], strides = [1, 1]} : vector<8x192xf32> to vector<8x8xf32>
    %173 = tpu.concatenate %169, %170, %171, %172 in 0 : vector<8x8xf32>, vector<8x8xf32>, vector<8x8xf32>, vector<8x8xf32> -> vector<32x8xf32>
    %174 = vector.extract_strided_slice %163 {offsets = [0, 64], sizes = [8, 32], strides = [1, 1]} : vector<8x192xf32> to vector<8x32xf32>
    %175 = vector.extract_strided_slice %163 {offsets = [0, 96], sizes = [8, 32], strides = [1, 1]} : vector<8x192xf32> to vector<8x32xf32>
    %176 = vector.extract_strided_slice %163 {offsets = [0, 128], sizes = [8, 32], strides = [1, 1]} : vector<8x192xf32> to vector<8x32xf32>
    %177 = vector.extract_strided_slice %163 {offsets = [0, 160], sizes = [8, 32], strides = [1, 1]} : vector<8x192xf32> to vector<8x32xf32>
    %178 = tpu.concatenate %174, %175, %176, %177 in 0 : vector<8x32xf32>, vector<8x32xf32>, vector<8x32xf32>, vector<8x32xf32> -> vector<32x32xf32>
    %179 = arith.truncf %168 : vector<32x8xf32> to vector<32x8xbf16>
    %180 = arith.truncf %173 : vector<32x8xf32> to vector<32x8xbf16>
    %cst_40 = arith.constant dense<0.000000e+00> : vector<32x32xf32>
    %181 = tpu.matmul %179, %180, %cst_40 {dimension_numbers = #tpu.dot_dimension_numbers<[1], [1], [0], [0], [0, 0, 1, 0], [], []>} : vector<32x8xbf16>, vector<32x8xbf16>, vector<32x32xf32> -> vector<32x32xf32>
    %cst_41 = arith.constant 0.353553385 : f32
    %182 = vector.broadcast %cst_41 : f32 to vector<32x32xf32>
    %183 = arith.mulf %181, %182 : vector<32x32xf32>
    %184 = arith.addf %183, %1 : vector<32x32xf32>
    %cst_42 = arith.constant dense<0xFF800000> : vector<32xf32>
    %185 = vector.multi_reduction <maximumf>, %184, %cst_42 [1] : vector<32x32xf32> to vector<32xf32>
    %186 = vector.shape_cast %185 : vector<32xf32> to vector<32x1xf32>
    %187 = vector.broadcast %186 : vector<32x1xf32> to vector<32x32xf32>
    %188 = arith.subf %184, %187 : vector<32x32xf32>
    %189 = math.exp %188 : vector<32x32xf32>
    %cst_43 = arith.constant dense<0.000000e+00> : vector<32xf32>
    %190 = vector.multi_reduction <add>, %189, %cst_43 [1] : vector<32x32xf32> to vector<32xf32>
    %191 = vector.shape_cast %190 : vector<32xf32> to vector<32x1xf32>
    %192 = tpu.reciprocal %191 {approx = true} : vector<32x1xf32> -> vector<32x1xf32>
    %193 = vector.broadcast %192 : vector<32x1xf32> to vector<32x32xf32>
    %194 = arith.mulf %189, %193 : vector<32x32xf32>
    %195 = arith.truncf %194 : vector<32x32xf32> to vector<32x32xbf16>
    %196 = arith.truncf %178 : vector<32x32xf32> to vector<32x32xbf16>
    %cst_44 = arith.constant dense<0.000000e+00> : vector<32x32xf32>
    %197 = tpu.matmul %195, %196, %cst_44 {dimension_numbers = #tpu.dot_dimension_numbers<[1], [0], [0], [1], [0, 0, 1, 1], [], []>} : vector<32x32xbf16>, vector<32x32xbf16>, vector<32x32xf32> -> vector<32x32xf32>
    %198 = vector.extract_strided_slice %197 {offsets = [0, 0], sizes = [8, 32], strides = [1, 1]} : vector<32x32xf32> to vector<8x32xf32>
    %199 = vector.extract_strided_slice %197 {offsets = [8, 0], sizes = [8, 32], strides = [1, 1]} : vector<32x32xf32> to vector<8x32xf32>
    %200 = arith.addf %198, %199 : vector<8x32xf32>
    %201 = vector.extract_strided_slice %197 {offsets = [16, 0], sizes = [8, 32], strides = [1, 1]} : vector<32x32xf32> to vector<8x32xf32>
    %202 = arith.addf %200, %201 : vector<8x32xf32>
    %203 = vector.extract_strided_slice %197 {offsets = [24, 0], sizes = [8, 32], strides = [1, 1]} : vector<32x32xf32> to vector<8x32xf32>
    %204 = arith.addf %202, %203 : vector<8x32xf32>
    %205 = arith.addf %129, %204 : vector<8x32xf32>
    %206 = vector.broadcast %134 : vector<1x32xf32> to vector<8x32xf32>
    %207 = arith.addf %205, %206 : vector<8x32xf32>
    %cst_45 = arith.constant dense<0.000000e+00> : vector<8xf32>
    %208 = vector.multi_reduction <add>, %207, %cst_45 [1] : vector<8x32xf32> to vector<8xf32>
    %209 = vector.shape_cast %208 : vector<8xf32> to vector<8x1xf32>
    %cst_46 = arith.constant 3.200000e+01 : f32
    %210 = vector.broadcast %cst_46 : f32 to vector<8x1xf32>
    %211 = arith.divf %209, %210 : vector<8x1xf32>
    %212 = arith.mulf %207, %207 : vector<8x32xf32>
    %cst_47 = arith.constant dense<0.000000e+00> : vector<8xf32>
    %213 = vector.multi_reduction <add>, %212, %cst_47 [1] : vector<8x32xf32> to vector<8xf32>
    %214 = vector.shape_cast %213 : vector<8xf32> to vector<8x1xf32>
    %cst_48 = arith.constant 3.200000e+01 : f32
    %215 = vector.broadcast %cst_48 : f32 to vector<8x1xf32>
    %216 = arith.divf %214, %215 : vector<8x1xf32>
    %217 = arith.mulf %211, %211 : vector<8x1xf32>
    %218 = arith.subf %216, %217 : vector<8x1xf32>
    %219 = vector.broadcast %211 : vector<8x1xf32> to vector<8x32xf32>
    %220 = arith.subf %207, %219 : vector<8x32xf32>
    %cst_49 = arith.constant 9.99999974E-6 : f32
    %221 = vector.broadcast %cst_49 : f32 to vector<8x1xf32>
    %222 = arith.addf %218, %221 : vector<8x1xf32>
    %223 = math.rsqrt %222 : vector<8x1xf32>
    %224 = vector.broadcast %223 : vector<8x1xf32> to vector<8x32xf32>
    %225 = arith.mulf %220, %224 : vector<8x32xf32>
    %226 = vector.broadcast %135 : vector<1x32xf32> to vector<8x32xf32>
    %227 = arith.mulf %225, %226 : vector<8x32xf32>
    %228 = vector.broadcast %136 : vector<1x32xf32> to vector<8x32xf32>
    %229 = arith.addf %227, %228 : vector<8x32xf32>
    %230 = vector.extract_strided_slice %131 {offsets = [0, 0], sizes = [32, 128], strides = [1, 1]} : vector<32x320xbf16> to vector<32x128xbf16>
    %231 = arith.truncf %229 : vector<8x32xf32> to vector<8x32xbf16>
    %cst_50 = arith.constant dense<0.000000e+00> : vector<8x128xf32>
    %232 = tpu.matmul %231, %230, %cst_50 {dimension_numbers = #tpu.dot_dimension_numbers<[1], [0], [0], [1], [0, 0, 1, 1], [], []>} : vector<8x32xbf16>, vector<32x128xbf16>, vector<8x128xf32> -> vector<8x128xf32>
    %233 = vector.broadcast %138 : vector<1x128xf32> to vector<8x128xf32>
    %234 = arith.addf %232, %233 : vector<8x128xf32>
    %cst_51 = arith.constant 5.000000e-01 : f32
    %235 = vector.broadcast %cst_51 : f32 to vector<8x128xf32>
    %236 = arith.mulf %235, %234 : vector<8x128xf32>
    %cst_52 = arith.constant 0.707106769 : f32
    %237 = vector.broadcast %cst_52 : f32 to vector<8x128xf32>
    %238 = arith.mulf %234, %237 : vector<8x128xf32>
    %239 = math.erf %238 : vector<8x128xf32>
    %cst_53 = arith.constant 1.000000e+00 : f32
    %240 = vector.broadcast %cst_53 : f32 to vector<8x128xf32>
    %241 = arith.addf %240, %239 : vector<8x128xf32>
    %242 = arith.mulf %236, %241 : vector<8x128xf32>
    %c1_54 = arith.constant 1 : index
    %c0_55 = arith.constant 0 : index
    %c0_56 = arith.constant 0 : index
    %243 = vector.load %arg4[%c1_54, %c0_55, %c0_56] : memref<2x128x32xbf16, #tpu.memory_space<vmem>>, vector<1x128x32xbf16>
    %244 = vector.shape_cast %243 : vector<1x128x32xbf16> to vector<128x32xbf16>
    %245 = arith.truncf %242 : vector<8x128xf32> to vector<8x128xbf16>
    %cst_57 = arith.constant dense<0.000000e+00> : vector<8x32xf32>
    %246 = tpu.matmul %245, %244, %cst_57 {dimension_numbers = #tpu.dot_dimension_numbers<[1], [0], [0], [1], [0, 0, 1, 1], [], []>} : vector<8x128xbf16>, vector<128x32xbf16>, vector<8x32xf32> -> vector<8x32xf32>
    %247 = vector.broadcast %137 : vector<1x32xf32> to vector<8x32xf32>
    %248 = arith.addf %246, %247 : vector<8x32xf32>
    %249 = arith.addf %207, %248 : vector<8x32xf32>
    %cst_58 = arith.constant dense<0.000000e+00> : vector<8xf32>
    %250 = vector.multi_reduction <add>, %249, %cst_58 [1] : vector<8x32xf32> to vector<8xf32>
    %251 = vector.shape_cast %250 : vector<8xf32> to vector<8x1xf32>
    %cst_59 = arith.constant 3.200000e+01 : f32
    %252 = vector.broadcast %cst_59 : f32 to vector<8x1xf32>
    %253 = arith.divf %251, %252 : vector<8x1xf32>
    %254 = arith.mulf %249, %249 : vector<8x32xf32>
    %cst_60 = arith.constant dense<0.000000e+00> : vector<8xf32>
    %255 = vector.multi_reduction <add>, %254, %cst_60 [1] : vector<8x32xf32> to vector<8xf32>
    %256 = vector.shape_cast %255 : vector<8xf32> to vector<8x1xf32>
    %cst_61 = arith.constant 3.200000e+01 : f32
    %257 = vector.broadcast %cst_61 : f32 to vector<8x1xf32>
    %258 = arith.divf %256, %257 : vector<8x1xf32>
    %259 = arith.mulf %253, %253 : vector<8x1xf32>
    %260 = arith.subf %258, %259 : vector<8x1xf32>
    %261 = vector.broadcast %253 : vector<8x1xf32> to vector<8x32xf32>
    %262 = arith.subf %249, %261 : vector<8x32xf32>
    %cst_62 = arith.constant 9.99999974E-6 : f32
    %263 = vector.broadcast %cst_62 : f32 to vector<8x1xf32>
    %264 = arith.addf %260, %263 : vector<8x1xf32>
    %265 = math.rsqrt %264 : vector<8x1xf32>
    %266 = vector.broadcast %265 : vector<8x1xf32> to vector<8x32xf32>
    %267 = arith.mulf %262, %266 : vector<8x32xf32>
    %c2 = arith.constant 2 : index
    %c0_63 = arith.constant 0 : index
    %c0_64 = arith.constant 0 : index
    %268 = vector.load %arg3[%c2, %c0_63, %c0_64] : memref<3x32x320xbf16, #tpu.memory_space<vmem>>, vector<1x32x320xbf16>
    %269 = vector.shape_cast %268 : vector<1x32x320xbf16> to vector<32x320xbf16>
    %270 = vector.extract_strided_slice %269 {offsets = [0, 0], sizes = [32, 128], strides = [1, 1]} : vector<32x320xbf16> to vector<32x128xbf16>
    %271 = arith.truncf %267 : vector<8x32xf32> to vector<8x32xbf16>
    %cst_65 = arith.constant dense<0.000000e+00> : vector<8x128xf32>
    %272 = tpu.matmul %271, %270, %cst_65 {dimension_numbers = #tpu.dot_dimension_numbers<[1], [0], [0], [1], [0, 0, 1, 1], [], []>} : vector<8x32xbf16>, vector<32x128xbf16>, vector<8x128xf32> -> vector<8x128xf32>
    %273 = vector.broadcast %3 : vector<1x128xf32> to vector<8x128xf32>
    %274 = arith.addf %272, %273 : vector<8x128xf32>
    %c0_66 = arith.constant 0 : index
    %c0_67 = arith.constant 0 : index
    %275 = vector.load %arg6[%c0_66, %c0_67] : memref<8x128xf32, #tpu.memory_space<vmem>>, vector<8x128xf32>
    tpu.vector_store %arg6[%c0_66, %c0_67], %274 {strides = array<i32>} : memref<8x128xf32, #tpu.memory_space<vmem>>, vector<8x128xf32>,
    return
  }
  func.func @transform_0(%arg0: i32) -> (i32, i32) {
    %c0_i32 = arith.constant 0 : i32
    %c0_i32_0 = arith.constant 0 : i32
    %c0_i32_1 = arith.constant 0 : i32
    return %c0_i32, %c0_i32_0 : i32, i32
  }
  func.func @transform_1(%arg0: i32) -> (i32, i32) {
    %c0_i32 = arith.constant 0 : i32
    %c0_i32_0 = arith.constant 0 : i32
    %c0_i32_1 = arith.constant 0 : i32
    return %c0_i32, %c0_i32_0 : i32, i32
  }
  func.func @transform_2(%arg0: i32) -> (i32, i32, i32) {
    %c0_i32 = arith.constant 0 : i32
    %c0_i32_0 = arith.constant 0 : i32
    %c0_i32_1 = arith.constant 0 : i32
    %c0_i32_2 = arith.constant 0 : i32
    return %c0_i32, %c0_i32_0, %c0_i32_1 : i32, i32, i32
  }
  func.func @transform_3(%arg0: i32) -> (i32, i32, i32) {
    %c0_i32 = arith.constant 0 : i32
    %c0_i32_0 = arith.constant 0 : i32
    %c0_i32_1 = arith.constant 0 : i32
    %c0_i32_2 = arith.constant 0 : i32
    return %c0_i32, %c0_i32_0, %c0_i32_1 : i32, i32, i32
  }
  func.func @transform_4(%arg0: i32) -> (i32, i32) {
    %c0_i32 = arith.constant 0 : i32
    %c0_i32_0 = arith.constant 0 : i32
    %c0_i32_1 = arith.constant 0 : i32
    return %c0_i32, %c0_i32_0 : i32, i32
  }
  func.func @transform_5(%arg0: i32) -> (i32, i32) {
    %c0_i32 = arith.constant 0 : i32
    %c0_i32_0 = arith.constant 0 : i32
    %c0_i32_1 = arith.constant 0 : i32
    return %c0_i32, %c0_i32_0 : i32, i32
  }
}

</mosaic_0001>

<llo_original>
// kernel: tpu_custom_call.1
$region0: #{tpu_custom_call.1}
  #allocation0 [shape = 'u32[]', space=smem, size = 0x4, offset = 0x4, fixed_abs, tag = 'smem constant byte address 0x4 - core index']
  #allocation1 [shape = 'u32[72,128]{1,0:T(1,128)}', space=vmem, size = 0x9000, scoped, tag = 'internal scratch']
  %s0 = inlined_call_operand.vmem [shape: f32[8,256], index: 0, kind: input, shape index: {}]
  %s1 = inlined_call_operand.vmem [shape: bf16[256,32], index: 1, kind: input, shape index: {}]
  %s2 = inlined_call_operand.vmem [shape: bf16[3,32,320], index: 2, kind: input, shape index: {}]
  %s3 = inlined_call_operand.vmem [shape: bf16[2,128,32], index: 3, kind: input, shape index: {}]
  %s4 = inlined_call_operand.vmem [shape: f32[48,128], index: 4, kind: input, shape index: {}]
  %s5 = inlined_call_operand.hbm [shape: f32[8,128], index: 5, kind: output, shape index: {}]
  %s6 = sld [smem:[#allocation0]]
  $region30: #{tpu_custom_call.1} parent=0
    _
  %s8 = ssub.s32 1, %s6
  %s9 = scalar_select 0, %s8, %s6
  $region1: #{tpu_custom_call.1} parent=0
    #allocation2 [shape = 'u8[4096]{0}', space=vmem, size = 0x1000, scoped, tag = 'output window, operand 0, single buffered']
    #allocation3 [shape = 's32[1]{0}', space=sflag, size = 0x4, scoped, tag = 'scoped memory for tpu_custom_call.1']
    %10 = vsyncpa [#allocation3], 0
    // Predicated region
    $region2: #{tpu_custom_call.1} parent=1 // pred_check
      _
    $region3: #{tpu_custom_call.1} parent=1 // pred_check_branch
      %12 = sbr.rel (0) target = $region5
    $region4: #{tpu_custom_call.1} parent=1 // pred_region
      _
    $region5: #{tpu_custom_call.1} parent=1 // pred_fallthru
      _
    // Predicated region
    $region6: #{tpu_custom_call.1} parent=1 // pred_check
      _
    $region7: #{tpu_custom_call.1} parent=1 // pred_check_branch
      %14 = sbr.rel (0) target = $region9
    $region8: #{tpu_custom_call.1} parent=1 // pred_region
      _
    $region9: #{tpu_custom_call.1} parent=1 // pred_fallthru
      _
    // Predicated region
    $region10: #{tpu_custom_call.1} parent=1 // pred_check
      _
    $region11: #{tpu_custom_call.1} parent=1 // pred_check_branch
      %16 = sbr.rel (0) target = $region13
    $region12: #{tpu_custom_call.1} parent=1 // pred_region
      _
    $region13: #{tpu_custom_call.1} parent=1 // pred_fallthru
      _
    // Predicated region
    $region14: #{tpu_custom_call.1} parent=1 // pred_check
      _
    $region15: #{tpu_custom_call.1} parent=1 // pred_check_branch
      %18 = sbr.rel (0) target = $region17
    $region16: #{tpu_custom_call.1} parent=1 // pred_region
      _
    $region17: #{tpu_custom_call.1} parent=1 // pred_fallthru
      _
    // Predicated region
    $region18: #{tpu_custom_call.1} parent=1 // pred_check
      _
    $region19: #{tpu_custom_call.1} parent=1 // pred_check_branch
      %20 = sbr.rel (0) target = $region21
    $region20: #{tpu_custom_call.1} parent=1 // pred_region
      _
    $region21: #{tpu_custom_call.1} parent=1 // pred_fallthru
      _
    %v22 = vld [vmem:[%s4] sm:$0xff]
    %v23 = vld [vmem:[%s4 + $0x8] sm:$0xff]
    %v24 = vld [vmem:[%s4 + $0x10] sm:$0xff]
    %v25 = vld [vmem:[%s4 + $0x18] sm:$0xff]
    %v26 = vld [vmem:[%s4 + $0x20] sm:$0xff]
    %v27 = vld [vmem:[%s4 + $0x28] sm:$0xff]
    %v28 = vld [vmem:[%s0] sm:$0xff]
    %v29 = vld [vmem:[%s0 + $0x8] sm:$0xff]
    %v30 = vld [vmem:[%s1] sm:$0xf]
    %v31 = vld [vmem:[%s1 + $0x4] sm:$0xf]
    %v32 = vld [vmem:[%s1 + $0x8] sm:$0xf]
    %v33 = vld [vmem:[%s1 + $0xc] sm:$0xf]
    %v34 = vld [vmem:[%s1 + $0x10] sm:$0xf]
    %v35 = vld [vmem:[%s1 + $0x14] sm:$0xf]
    %v36 = vld [vmem:[%s1 + $0x18] sm:$0xf]
    %v37 = vld [vmem:[%s1 + $0x1c] sm:$0xf]
    %v38 = vld [vmem:[%s1 + $0x20] sm:$0xf]
    %v39 = vld [vmem:[%s1 + $0x24] sm:$0xf]
    %v40 = vld [vmem:[%s1 + $0x28] sm:$0xf]
    %v41 = vld [vmem:[%s1 + $0x2c] sm:$0xf]
    %v42 = vld [vmem:[%s1 + $0x30] sm:$0xf]
    %v43 = vld [vmem:[%s1 + $0x34] sm:$0xf]
    %v44 = vld [vmem:[%s1 + $0x38] sm:$0xf]
    %v45 = vld [vmem:[%s1 + $0x3c] sm:$0xf]
    %v46 = vld [vmem:[%s1 + $0x40] sm:$0xf]
    %v47 = vld [vmem:[%s1 + $0x44] sm:$0xf]
    %v48 = vld [vmem:[%s1 + $0x48] sm:$0xf]
    %v49 = vld [vmem:[%s1 + $0x4c] sm:$0xf]
    %v50 = vld [vmem:[%s1 + $0x50] sm:$0xf]
    %v51 = vld [vmem:[%s1 + $0x54] sm:$0xf]
    %v52 = vld [vmem:[%s1 + $0x58] sm:$0xf]
    %v53 = vld [vmem:[%s1 + $0x5c] sm:$0xf]
    %v54 = vld [vmem:[%s1 + $0x60] sm:$0xf]
    %v55 = vld [vmem:[%s1 + $0x64] sm:$0xf]
    %v56 = vld [vmem:[%s1 + $0x68] sm:$0xf]
    %v57 = vld [vmem:[%s1 + $0x6c] sm:$0xf]
    %v58 = vld [vmem:[%s1 + $0x70] sm:$0xf]
    %v59 = vld [vmem:[%s1 + $0x74] sm:$0xf]
    %v60 = vld [vmem:[%s1 + $0x78] sm:$0xf]
    %v61 = vld [vmem:[%s1 + $0x7c] sm:$0xf]
    %v62 = vpack.c.bf16 %v28, %v28
    %v63 = vpack.c.bf16 %v29, %v29
    %v64 = vperm.slane %v26, 0
    %v97 = vunpack.c.l.b16 %v30
    %v98 = vunpack.c.l.b16 %v31
    %v99 = vunpack.c.l.b16 %v32
    %v100 = vunpack.c.l.b16 %v33
    %v101 = vunpack.c.l.b16 %v34
    %v102 = vunpack.c.l.b16 %v35
    %v103 = vunpack.c.l.b16 %v36
    %v104 = vunpack.c.l.b16 %v37
    %v105 = vunpack.c.l.b16 %v38
    %v106 = vunpack.c.l.b16 %v39
    %v107 = vunpack.c.l.b16 %v40
    %v108 = vunpack.c.l.b16 %v41
    %v109 = vunpack.c.l.b16 %v42
    %v110 = vunpack.c.l.b16 %v43
    %v111 = vunpack.c.l.b16 %v44
    %v112 = vunpack.c.l.b16 %v45
    %v113 = vunpack.c.l.b16 %v46
    %v114 = vunpack.c.l.b16 %v47
    %v115 = vunpack.c.l.b16 %v48
    %v116 = vunpack.c.l.b16 %v49
    %v117 = vunpack.c.l.b16 %v50
    %v118 = vunpack.c.l.b16 %v51
    %v119 = vunpack.c.l.b16 %v52
    %v120 = vunpack.c.l.b16 %v53
    %v121 = vunpack.c.l.b16 %v54
    %v122 = vunpack.c.l.b16 %v55
    %v123 = vunpack.c.l.b16 %v56
    %v124 = vunpack.c.l.b16 %v57
    %v125 = vunpack.c.l.b16 %v58
    %v126 = vunpack.c.l.b16 %v59
    %v127 = vunpack.c.l.b16 %v60
    %v128 = vunpack.c.l.b16 %v61
    %v129 = vpack.c.b16 %v98, %v97
    %v130 = vpack.c.b16 %v100, %v99
    %v131 = vpack.c.b16 %v102, %v101
    %v132 = vpack.c.b16 %v104, %v103
    %v133 = vpack.c.b16 %v106, %v105
    %v134 = vpack.c.b16 %v108, %v107
    %v135 = vpack.c.b16 %v110, %v109
    %v136 = vpack.c.b16 %v112, %v111
    %v137 = vpack.c.b16 %v114, %v113
    %v138 = vpack.c.b16 %v116, %v115
    %v139 = vpack.c.b16 %v118, %v117
    %v140 = vpack.c.b16 %v120, %v119
    %v141 = vpack.c.b16 %v122, %v121
    %v142 = vpack.c.b16 %v124, %v123
    %v143 = vpack.c.b16 %v126, %v125
    %v144 = vpack.c.b16 %v128, %v127
    %161 = vmatpush.bf16.msra.mxu0 %v136
    %162 = vmatpush.bf16.msra.mxu0 %v135
    %163 = vmatpush.bf16.msra.mxu0 %v134
    %164 = vmatpush.bf16.msra.mxu0 %v133
    %165 = vmatpush.bf16.msra.mxu0 %v132
    %166 = vmatpush.bf16.msra.mxu0 %v131
    %167 = vmatpush.bf16.msra.mxu0 %v130
    %168 = vmatpush.bf16.msra.mxu0 %v129
    %169 = vmatmul.bf16.gmra.mxu0 %v62
    %v170 = vpop.f32.mrf.mxu0
    %v171 = vadd.f32 %v64, %v170
    %v172 = vpop.f32.mrf.mxu0
    %173 = vdwg.mxu0
    %174 = vmatpush.bf16.msra.mxu0 %v144
    %175 = vmatpush.bf16.msra.mxu0 %v143
    %176 = vmatpush.bf16.msra.mxu0 %v142
    %177 = vmatpush.bf16.msra.mxu0 %v141
    %178 = vmatpush.bf16.msra.mxu0 %v140
    %179 = vmatpush.bf16.msra.mxu0 %v139
    %180 = vmatpush.bf16.msra.mxu0 %v138
    %181 = vmatpush.bf16.msra.mxu0 %v137
    %182 = vmatmul.bf16.gmra.mxu0 %v63
    %v183 = vpop.f32.mrf.mxu0
    %v184 = vadd.f32 %v171, %v183
    %v185 = vpop.f32.mrf.mxu0
    %186 = vdwg.mxu0
    %v187 = vld [vmem:[%s2] sm:$0xff]
    %v188 = vld [vmem:[%s2 + $0x8] sm:$0xf]
    %v189 = vld [vmem:[%s2 + $0xc] sm:$0xff]
    %v190 = vld [vmem:[%s2 + $0x14] sm:$0xf]
    %v191 = vld [vmem:[%s2 + $0x18] sm:$0xff]
    %v192 = vld [vmem:[%s2 + $0x20] sm:$0xf]
    %v193 = vld [vmem:[%s2 + $0x24] sm:$0xff]
    %v194 = vld [vmem:[%s2 + $0x2c] sm:$0xf]
    %vm195 = vcmask 261120
    %v196 = vsel %vm195, %v184, 0.0
    %197 = vadd.xlane.f32.xlu0 %v196
    %v198 = vpop.xlane.xlu0 %197
    %v199 = vrcp.pop 32.0
    %v200 = vmul.f32 32.0, %v199
    %v201 = vsub.f32 1.0, %v200
    %v202 = vmul.f32 %v199, %v201
    %v203 = vadd.f32 %v199, %v202
    %vm204 = vweird.f32 %v199
    %v205 = vsel %vm204, %v199, %v203
    %v206 = vmul.f32 %v198, %v205
    %v207 = vmul.f32 %v184, %v184
    %v208 = vsel %vm195, %v207, 0.0
    %209 = vadd.xlane.f32.xlu0 %v208
    %v210 = vpop.xlane.xlu0 %209
    %v211 = vmul.f32 %v210, %v205
    %v212 = vmul.f32 %v206, %v206
    %v213 = vsub.f32 %v211, %v212
    %v214 = vsub.f32 %v184, %v206
    %v215 = vadd.f32 %v213, 1e-05
    %v216 = vrsqrt.pop %v215
    %v217 = vmul.f32 %v216, %v215
    %v218 = vmul.f32 %v217, %v216
    %v219 = vmul.f32 0.5, %v218
    %v220 = vsub.f32 1.5, %v219
    %v221 = vmul.f32 %v216, %v220
    %vm222 = vweird.f32 %v215
    %vm223 = vweird.f32 %v216
    %vm224 = vmor %vm222, %vm223
    %v225 = vsel %vm224, %v216, %v221
    %v226 = vmul.f32 %v214, %v225
    %v227 = vperm.slane %v26, 2
    %v228 = vmul.f32 %v226, %v227
    %v229 = vperm.slane %v26, 3
    %v230 = vadd.f32 %v228, %v229
    %v231 = vpack.c.bf16 %v230, %v230
    %v240 = vunpack.c.h.b16 %v187
    %v241 = vunpack.c.l.b16 %v188
    %v242 = vunpack.c.h.b16 %v189
    %v243 = vunpack.c.l.b16 %v190
    %v244 = vunpack.c.h.b16 %v191
    %v245 = vunpack.c.l.b16 %v192
    %v246 = vunpack.c.h.b16 %v193
    %v247 = vunpack.c.l.b16 %v194
    %v248 = vpack.c.b16 %v242, %v240
    %v249 = vpack.c.b16 %v243, %v241
    %v250 = vpack.c.b16 %v246, %v244
    %v251 = vpack.c.b16 %v247, %v245
    %v257 = vsel %vm195, %v231, 0
    %259 = vmatpush.bf16.msra.mxu0 0
    %260 = vmatpush.bf16.msra.mxu0 0
    %261 = vmatpush.bf16.msra.mxu0 0
    %262 = vmatpush.bf16.msra.mxu0 0
    %263 = vmatpush.bf16.msra.mxu0 0
    %264 = vmatpush.bf16.msra.mxu0 0
    %265 = vmatpush.bf16.msra.mxu0 %v250
    %266 = vmatpush.bf16.msra.mxu0 %v248
    %267 = vmatmul.bf16.gmra.mxu0 %v257
    %v268 = vpop.f32.mrf.mxu0
    %v269 = vadd.f32 0.0, %v268
    %v270 = vpop.f32.mrf.mxu0
    %271 = vdwg.mxu0
    %272 = vmatpush.bf16.msra.mxu0 0
    %273 = vmatpush.bf16.msra.mxu0 0
    %274 = vmatpush.bf16.msra.mxu0 0
    %275 = vmatpush.bf16.msra.mxu0 0
    %276 = vmatpush.bf16.msra.mxu0 0
    %277 = vmatpush.bf16.msra.mxu0 0
    %278 = vmatpush.bf16.msra.mxu0 %v251
    %279 = vmatpush.bf16.msra.mxu0 %v249
    %280 = vmatmul.bf16.gmra.mxu0 %v257
    %v281 = vpop.f32.mrf.mxu0
    %v282 = vadd.f32 0.0, %v281
    %v283 = vpop.f32.mrf.mxu0
    %284 = vdwg.mxu0
    %286 = vrot.lane.b32.xlu0 %v269, 120
    %v287 = vpop.permute.xlu0 %286
    %289 = vrot.lane.b32.xlu0 %v269, 112
    %v290 = vpop.permute.xlu0 %289
    %292 = vrot.lane.b32.xlu0 %v269, 104
    %v293 = vpop.permute.xlu0 %292
    %295 = vrot.lane.b32.xlu0 %v269, 96
    %v296 = vpop.permute.xlu0 %295
    %299 = vrot.lane.b32.xlu0 %v282, 64
    %v300 = vpop.permute.xlu0 %299
    %302 = vrot.lane.b32.xlu0 %v282, 32
    %v303 = vpop.permute.xlu0 %302
    %v305 = vpack.c.bf16 %v287, %v269
    %v306 = vpack.c.bf16 %v293, %v290
    %309 = vrot.lane.b32.xlu0 %v305, 96
    %v310 = vpop.permute.xlu0 %309
    %311 = vrot.lane.b32.xlu0 %v306, 96
    %v312 = vpop.permute.xlu0 %311
    %vm313 = vcmask 64512
    %v315 = vsel %vm313, %v305, 0
    %v318 = vsel %vm313, %v306, 0
    %v321 = vsel %vm313, %v310, 0
    %v324 = vsel %vm313, %v312, 0
    %326 = vmatpush.bf16.xpose.msra.mxu0 0
    %327 = vmatpush.bf16.xpose.msra.mxu0 0
    %328 = vmatpush.bf16.xpose.msra.mxu0 0
    %329 = vmatpush.bf16.xpose.msra.mxu0 0
    %330 = vmatpush.bf16.xpose.msra.mxu0 0
    %331 = vmatpush.bf16.xpose.msra.mxu0 0
    %332 = vmatpush.bf16.xpose.msra.mxu0 %v324
    %333 = vmatpush.bf16.xpose.msra.mxu0 %v321
    %334 = vmatmul.bf16.gmra.mxu0 %v315
    %v335 = vpop.f32.mrf.mxu0
    %v336 = vadd.f32 0.0, %v335
    %v337 = vpop.f32.mrf.mxu0
    %v338 = vadd.f32 0.0, %v337
    %339 = vmatmul.bf16.gmra.mxu0 %v318
    %v340 = vpop.f32.mrf.mxu0
    %v341 = vadd.f32 0.0, %v340
    %v342 = vpop.f32.mrf.mxu0
    %v343 = vadd.f32 0.0, %v342
    %344 = vdwg.mxu0
    %v345 = vmul.f32 %v336, 0.35355338
    %v346 = vmul.f32 %v338, 0.35355338
    %v347 = vmul.f32 %v341, 0.35355338
    %v348 = vmul.f32 %v343, 0.35355338
    %v349 = vadd.f32 %v345, %v22
    %v350 = vadd.f32 %v346, %v23
    %v351 = vadd.f32 %v347, %v24
    %v352 = vadd.f32 %v348, %v25
    %v353 = vsel %vm195, %v349, -inf
    %354 = vmax.xlane.f32.xlu0 %v353
    %v355 = vpop.xlane.xlu0 %354
    %v356 = vsel %vm195, %v350, -inf
    %357 = vmax.xlane.f32.xlu0 %v356
    %v358 = vpop.xlane.xlu0 %357
    %v359 = vsel %vm195, %v351, -inf
    %360 = vmax.xlane.f32.xlu0 %v359
    %v361 = vpop.xlane.xlu0 %360
    %v362 = vsel %vm195, %v352, -inf
    %363 = vmax.xlane.f32.xlu0 %v362
    %v364 = vpop.xlane.xlu0 %363
    %v365 = vsub.f32 %v349, %v355
    %v366 = vsub.f32 %v350, %v358
    %v367 = vsub.f32 %v351, %v361
    %v368 = vsub.f32 %v352, %v364
    %v369 = vmul.f32 %v365, 1.442695
    %v370 = vpow.pop %v369
    %v371 = vmul.f32 %v366, 1.442695
    %v372 = vpow.pop %v371
    %v373 = vmul.f32 %v367, 1.442695
    %v374 = vpow.pop %v373
    %v375 = vmul.f32 %v368, 1.442695
    %v376 = vpow.pop %v375
    %v377 = vsel %vm195, %v370, 0.0
    %378 = vadd.xlane.f32.xlu0 %v377
    %v379 = vpop.xlane.xlu0 %378
    %v380 = vsel %vm195, %v372, 0.0
    %381 = vadd.xlane.f32.xlu0 %v380
    %v382 = vpop.xlane.xlu0 %381
    %v383 = vsel %vm195, %v374, 0.0
    %384 = vadd.xlane.f32.xlu0 %v383
    %v385 = vpop.xlane.xlu0 %384
    %v386 = vsel %vm195, %v376, 0.0
    %387 = vadd.xlane.f32.xlu0 %v386
    %v388 = vpop.xlane.xlu0 %387
    %v389 = vrcp.pop %v379
    %v390 = vrcp.pop %v382
    %v391 = vrcp.pop %v385
    %v392 = vrcp.pop %v388
    %v393 = vmul.f32 %v370, %v389
    %v394 = vmul.f32 %v372, %v390
    %v395 = vmul.f32 %v374, %v391
    %v396 = vmul.f32 %v376, %v392
    %v397 = vpack.c.bf16 %v394, %v393
    %v398 = vpack.c.bf16 %v396, %v395
    %v399 = vpack.c.bf16 %v296, %v269
    %v400 = vpack.c.bf16 %v303, %v300
    %403 = vrot.lane.b32.xlu0 %v399, 64
    %v404 = vpop.permute.xlu0 %403
    %405 = vrot.lane.b32.xlu0 %v400, 64
    %v406 = vpop.permute.xlu0 %405
    %v410 = vsel %vm195, %v397, 0
    %v413 = vsel %vm195, %v398, 0
    %415 = vmatpush.bf16.msra.mxu0 0
    %416 = vmatpush.bf16.msra.mxu0 0
    %417 = vmatpush.bf16.msra.mxu0 0
    %418 = vmatpush.bf16.msra.mxu0 0
    %419 = vmatpush.bf16.msra.mxu0 0
    %420 = vmatpush.bf16.msra.mxu0 0
    %421 = vmatpush.bf16.msra.mxu0 %v406
    %422 = vmatpush.bf16.msra.mxu0 %v404
    %423 = vmatmul.bf16.gmra.mxu0 %v410
    %v424 = vpop.f32.mrf.mxu0
    %v425 = vadd.f32 0.0, %v424
    %v426 = vpop.f32.mrf.mxu0
    %v427 = vadd.f32 0.0, %v426
    %428 = vmatmul.bf16.gmra.mxu0 %v413
    %v429 = vpop.f32.mrf.mxu0
    %v430 = vadd.f32 0.0, %v429
    %v431 = vpop.f32.mrf.mxu0
    %v432 = vadd.f32 0.0, %v431
    %433 = vdwg.mxu0
    %v434 = vadd.f32 %v425, %v427
    %v435 = vadd.f32 %v434, %v430
    %v436 = vadd.f32 %v435, %v432
    %v437 = vadd.f32 %v184, %v436
    %v438 = vperm.slane %v26, 4
    %v439 = vadd.f32 %v437, %v438
    %v440 = vsel %vm195, %v439, 0.0
    %441 = vadd.xlane.f32.xlu0 %v440
    %v442 = vpop.xlane.xlu0 %441
    %v443 = vmul.f32 %v442, %v205
    %v444 = vmul.f32 %v439, %v439
    %v445 = vsel %vm195, %v444, 0.0
    %446 = vadd.xlane.f32.xlu0 %v445
    %v447 = vpop.xlane.xlu0 %446
    %v448 = vmul.f32 %v447, %v205
    %v449 = vmul.f32 %v443, %v443
    %v450 = vsub.f32 %v448, %v449
    %v451 = vsub.f32 %v439, %v443
    %v452 = vadd.f32 %v450, 1e-05
    %v453 = vrsqrt.pop %v452
    %v454 = vmul.f32 %v453, %v452
    %v455 = vmul.f32 %v454, %v453
    %v456 = vmul.f32 0.5, %v455
    %v457 = vsub.f32 1.5, %v456
    %v458 = vmul.f32 %v453, %v457
    %vm459 = vweird.f32 %v452
    %vm460 = vweird.f32 %v453
    %vm461 = vmor %vm459, %vm460
    %v462 = vsel %vm461, %v453, %v458
    %v463 = vmul.f32 %v451, %v462
    %v464 = vperm.slane %v26, 5
    %v465 = vmul.f32 %v463, %v464
    %v466 = vperm.slane %v26, 6
    %v467 = vadd.f32 %v465, %v466
    %v468 = vpack.c.bf16 %v467, %v467
    %v469 = vperm.slane %v27, 0
    %v470 = vunpack.c.l.b16 %v187
    %v471 = vunpack.c.l.b16 %v189
    %v472 = vunpack.c.l.b16 %v191
    %v473 = vunpack.c.l.b16 %v193
    %v474 = vpack.c.b16 %v471, %v470
    %v475 = vpack.c.b16 %v473, %v472
    %v479 = vsel %vm195, %v468, 0
    %481 = vmatpush.bf16.msra.mxu0 0
    %482 = vmatpush.bf16.msra.mxu0 0
    %483 = vmatpush.bf16.msra.mxu0 0
    %484 = vmatpush.bf16.msra.mxu0 0
    %485 = vmatpush.bf16.msra.mxu0 0
    %486 = vmatpush.bf16.msra.mxu0 0
    %487 = vmatpush.bf16.msra.mxu0 %v475
    %488 = vmatpush.bf16.msra.mxu0 %v474
    %489 = vmatmul.bf16.gmra.mxu0 %v479
    %v490 = vpop.f32.mrf.mxu0
    %v491 = vadd.f32 %v469, %v490
    %v492 = vpop.f32.mrf.mxu0
    %493 = vdwg.mxu0
    %v494 = vmul.f32 %v491, 0.5
    %v495 = vmul.f32 %v491, 0.70710677
    %v496 = vmul.f32 %v495, %v495
    %v497 = vmin.f32 16.0, %v496
    %v498 = vmul.f32 %v497, 2.1237322e-06
    %v499 = vadd.f32 %v498, 0.00028619796
    %v500 = vmul.f32 %v497, %v499
    %v501 = vadd.f32 %v500, 0.0036580483
    %v502 = vmul.f32 %v497, %v501
    %v503 = vadd.f32 %v502, 0.05243302
    %v504 = vmul.f32 %v497, %v503
    %v505 = vadd.f32 %v504, 0.18741608
    %v506 = vmul.f32 %v497, %v505
    %v507 = vadd.f32 %v506, 1.1283791
    %v508 = vmul.f32 %v495, %v507
    %v509 = vmul.f32 %v497, 3.8918573e-05
    %v510 = vadd.f32 %v509, 0.001143296
    %v511 = vmul.f32 %v497, %v510
    %v512 = vadd.f32 %v511, 0.014752088
    %v513 = vmul.f32 %v497, %v512
    %v514 = vadd.f32 %v513, 0.112945676
    %v515 = vmul.f32 %v497, %v514
    %v516 = vadd.f32 %v515, 0.4994258
    %v517 = vmul.f32 %v497, %v516
    %v518 = vadd.f32 %v517, 1.0
    %v519 = vrcp.pop %v518
    %v520 = vmul.f32 %v518, %v519
    %v521 = vsub.f32 1.0, %v520
    %v522 = vmul.f32 %v519, %v521
    %v523 = vadd.f32 %v519, %v522
    %vm524 = vweird.f32 %v518
    %vm525 = vweird.f32 %v519
    %vm526 = vmor %vm524, %vm525
    %v527 = vsel %vm526, %v519, %v523
    %v528 = vand.u32 2147483647, %v518
    %vm529 = vcmp.eq.f32.partialorder %v528, 8.507059e+37
    %v530 = vand.u32 %v518, 2147483648
    %v531 = vor.u32 1.1754944e-38, %v530
    %v532 = vsel %vm529, %v531, %v527
    %v533 = vmul.f32 %v508, %v532
    %v534 = vmin.f32 %v533, 1.0
    %v535 = vmax.f32 %v534, -1.0
    %v536 = vadd.f32 %v535, 1.0
    %v537 = vmul.f32 %v494, %v536
    %v538 = vld [vmem:[%s3] sm:$0xf]
    %v539 = vld [vmem:[%s3 + $0x4] sm:$0xf]
    %v540 = vld [vmem:[%s3 + $0x8] sm:$0xf]
    %v541 = vld [vmem:[%s3 + $0xc] sm:$0xf]
    %v542 = vld [vmem:[%s3 + $0x10] sm:$0xf]
    %v543 = vld [vmem:[%s3 + $0x14] sm:$0xf]
    %v544 = vld [vmem:[%s3 + $0x18] sm:$0xf]
    %v545 = vld [vmem:[%s3 + $0x1c] sm:$0xf]
    %v546 = vld [vmem:[%s3 + $0x20] sm:$0xf]
    %v547 = vld [vmem:[%s3 + $0x24] sm:$0xf]
    %v548 = vld [vmem:[%s3 + $0x28] sm:$0xf]
    %v549 = vld [vmem:[%s3 + $0x2c] sm:$0xf]
    %v550 = vld [vmem:[%s3 + $0x30] sm:$0xf]
    %v551 = vld [vmem:[%s3 + $0x34] sm:$0xf]
    %v552 = vld [vmem:[%s3 + $0x38] sm:$0xf]
    %v553 = vld [vmem:[%s3 + $0x3c] sm:$0xf]
    %v554 = vpack.c.bf16 %v537, %v537
    %v555 = vperm.slane %v26, 7
    %v572 = vunpack.c.l.b16 %v538
    %v573 = vunpack.c.l.b16 %v539
    %v574 = vunpack.c.l.b16 %v540
    %v575 = vunpack.c.l.b16 %v541
    %v576 = vunpack.c.l.b16 %v542
    %v577 = vunpack.c.l.b16 %v543
    %v578 = vunpack.c.l.b16 %v544
    %v579 = vunpack.c.l.b16 %v545
    %v580 = vunpack.c.l.b16 %v546
    %v581 = vunpack.c.l.b16 %v547
    %v582 = vunpack.c.l.b16 %v548
    %v583 = vunpack.c.l.b16 %v549
    %v584 = vunpack.c.l.b16 %v550
    %v585 = vunpack.c.l.b16 %v551
    %v586 = vunpack.c.l.b16 %v552
    %v587 = vunpack.c.l.b16 %v553
    %v588 = vpack.c.b16 %v573, %v572
    %v589 = vpack.c.b16 %v575, %v574
    %v590 = vpack.c.b16 %v577, %v576
    %v591 = vpack.c.b16 %v579, %v578
    %v592 = vpack.c.b16 %v581, %v580
    %v593 = vpack.c.b16 %v583, %v582
    %v594 = vpack.c.b16 %v585, %v584
    %v595 = vpack.c.b16 %v587, %v586
    %604 = vmatpush.bf16.msra.mxu0 %v595
    %605 = vmatpush.bf16.msra.mxu0 %v594
    %606 = vmatpush.bf16.msra.mxu0 %v593
    %607 = vmatpush.bf16.msra.mxu0 %v592
    %608 = vmatpush.bf16.msra.mxu0 %v591
    %609 = vmatpush.bf16.msra.mxu0 %v590
    %610 = vmatpush.bf16.msra.mxu0 %v589
    %611 = vmatpush.bf16.msra.mxu0 %v588
    %612 = vmatmul.bf16.gmra.mxu0 %v554
    %v613 = vpop.f32.mrf.mxu0
    %v614 = vadd.f32 %v555, %v613
    %v615 = vpop.f32.mrf.mxu0
    %616 = vdwg.mxu0
    %v617 = vadd.f32 %v439, %v614
    %s618 = scalar_lea.vmem %s2, 48
    %v619 = vld [vmem:[%s618] sm:$0xff]
    %v620 = vld [vmem:[%s618 + $0x8] sm:$0xf]
    %v621 = vld [vmem:[%s618 + $0xc] sm:$0xff]
    %v622 = vld [vmem:[%s618 + $0x14] sm:$0xf]
    %v623 = vld [vmem:[%s618 + $0x18] sm:$0xff]
    %v624 = vld [vmem:[%s618 + $0x20] sm:$0xf]
    %v625 = vld [vmem:[%s618 + $0x24] sm:$0xff]
    %v626 = vld [vmem:[%s618 + $0x2c] sm:$0xf]
    %v627 = vsel %vm195, %v617, 0.0
    %628 = vadd.xlane.f32.xlu0 %v627
    %v629 = vpop.xlane.xlu0 %628
    %v630 = vmul.f32 %v629, %v205
    %v631 = vmul.f32 %v617, %v617
    %v632 = vsel %vm195, %v631, 0.0
    %633 = vadd.xlane.f32.xlu0 %v632
    %v634 = vpop.xlane.xlu0 %633
    %v635 = vmul.f32 %v634, %v205
    %v636 = vmul.f32 %v630, %v630
    %v637 = vsub.f32 %v635, %v636
    %v638 = vsub.f32 %v617, %v630
    %v639 = vadd.f32 %v637, 1e-05
    %v640 = vrsqrt.pop %v639
    %v641 = vmul.f32 %v640, %v639
    %v642 = vmul.f32 %v641, %v640
    %v643 = vmul.f32 0.5, %v642
    %v644 = vsub.f32 1.5, %v643
    %v645 = vmul.f32 %v640, %v644
    %vm646 = vweird.f32 %v639
    %vm647 = vweird.f32 %v640
    %vm648 = vmor %vm646, %vm647
    %v649 = vsel %vm648, %v640, %v645
    %v650 = vmul.f32 %v638, %v649
    %v651 = vperm.slane %v27, 1
    %v652 = vmul.f32 %v650, %v651
    %v653 = vperm.slane %v27, 2
    %v654 = vadd.f32 %v652, %v653
    %v655 = vpack.c.bf16 %v654, %v654
    %v664 = vunpack.c.h.b16 %v619
    %v665 = vunpack.c.l.b16 %v620
    %v666 = vunpack.c.h.b16 %v621
    %v667 = vunpack.c.l.b16 %v622
    %v668 = vunpack.c.h.b16 %v623
    %v669 = vunpack.c.l.b16 %v624
    %v670 = vunpack.c.h.b16 %v625
    %v671 = vunpack.c.l.b16 %v626
    %v672 = vpack.c.b16 %v666, %v664
    %v673 = vpack.c.b16 %v667, %v665
    %v674 = vpack.c.b16 %v670, %v668
    %v675 = vpack.c.b16 %v671, %v669
    %v681 = vsel %vm195, %v655, 0
    %683 = vmatpush.bf16.msra.mxu0 0
    %684 = vmatpush.bf16.msra.mxu0 0
    %685 = vmatpush.bf16.msra.mxu0 0
    %686 = vmatpush.bf16.msra.mxu0 0
    %687 = vmatpush.bf16.msra.mxu0 0
    %688 = vmatpush.bf16.msra.mxu0 0
    %689 = vmatpush.bf16.msra.mxu0 %v674
    %690 = vmatpush.bf16.msra.mxu0 %v672
    %691 = vmatmul.bf16.gmra.mxu0 %v681
    %v692 = vpop.f32.mrf.mxu0
    %v693 = vadd.f32 0.0, %v692
    %v694 = vpop.f32.mrf.mxu0
    %695 = vdwg.mxu0
    %696 = vmatpush.bf16.msra.mxu0 0
    %697 = vmatpush.bf16.msra.mxu0 0
    %698 = vmatpush.bf16.msra.mxu0 0
    %699 = vmatpush.bf16.msra.mxu0 0
    %700 = vmatpush.bf16.msra.mxu0 0
    %701 = vmatpush.bf16.msra.mxu0 0
    %702 = vmatpush.bf16.msra.mxu0 %v675
    %703 = vmatpush.bf16.msra.mxu0 %v673
    %704 = vmatmul.bf16.gmra.mxu0 %v681
    %v705 = vpop.f32.mrf.mxu0
    %v706 = vadd.f32 0.0, %v705
    %v707 = vpop.f32.mrf.mxu0
    %708 = vdwg.mxu0
    %710 = vrot.lane.b32.xlu0 %v693, 120
    %v711 = vpop.permute.xlu0 %710
    %713 = vrot.lane.b32.xlu0 %v693, 112
    %v714 = vpop.permute.xlu0 %713
    %716 = vrot.lane.b32.xlu0 %v693, 104
    %v717 = vpop.permute.xlu0 %716
    %719 = vrot.lane.b32.xlu0 %v693, 96
    %v720 = vpop.permute.xlu0 %719
    %723 = vrot.lane.b32.xlu0 %v706, 64
    %v724 = vpop.permute.xlu0 %723
    %726 = vrot.lane.b32.xlu0 %v706, 32
    %v727 = vpop.permute.xlu0 %726
    %v729 = vpack.c.bf16 %v711, %v693
    %v730 = vpack.c.bf16 %v717, %v714
    %733 = vrot.lane.b32.xlu0 %v729, 96
    %v734 = vpop.permute.xlu0 %733
    %735 = vrot.lane.b32.xlu0 %v730, 96
    %v736 = vpop.permute.xlu0 %735
    %v738 = vsel %vm313, %v729, 0
    %v741 = vsel %vm313, %v730, 0
    %v744 = vsel %vm313, %v734, 0
    %v747 = vsel %vm313, %v736, 0
    %749 = vmatpush.bf16.xpose.msra.mxu0 0
    %750 = vmatpush.bf16.xpose.msra.mxu0 0
    %751 = vmatpush.bf16.xpose.msra.mxu0 0
    %752 = vmatpush.bf16.xpose.msra.mxu0 0
    %753 = vmatpush.bf16.xpose.msra.mxu0 0
    %754 = vmatpush.bf16.xpose.msra.mxu0 0
    %755 = vmatpush.bf16.xpose.msra.mxu0 %v747
    %756 = vmatpush.bf16.xpose.msra.mxu0 %v744
    %757 = vmatmul.bf16.gmra.mxu0 %v738
    %v758 = vpop.f32.mrf.mxu0
    %v759 = vadd.f32 0.0, %v758
    %v760 = vpop.f32.mrf.mxu0
    %v761 = vadd.f32 0.0, %v760
    %762 = vmatmul.bf16.gmra.mxu0 %v741
    %v763 = vpop.f32.mrf.mxu0
    %v764 = vadd.f32 0.0, %v763
    %v765 = vpop.f32.mrf.mxu0
    %v766 = vadd.f32 0.0, %v765
    %767 = vdwg.mxu0
    %v768 = vmul.f32 %v759, 0.35355338
    %v769 = vmul.f32 %v761, 0.35355338
    %v770 = vmul.f32 %v764, 0.35355338
    %v771 = vmul.f32 %v766, 0.35355338
    %v772 = vadd.f32 %v768, %v22
    %v773 = vadd.f32 %v769, %v23
    %v774 = vadd.f32 %v770, %v24
    %v775 = vadd.f32 %v771, %v25
    %v776 = vsel %vm195, %v772, -inf
    %777 = vmax.xlane.f32.xlu0 %v776
    %v778 = vpop.xlane.xlu0 %777
    %v779 = vsel %vm195, %v773, -inf
    %780 = vmax.xlane.f32.xlu0 %v779
    %v781 = vpop.xlane.xlu0 %780
    %v782 = vsel %vm195, %v774, -inf
    %783 = vmax.xlane.f32.xlu0 %v782
    %v784 = vpop.xlane.xlu0 %783
    %v785 = vsel %vm195, %v775, -inf
    %786 = vmax.xlane.f32.xlu0 %v785
    %v787 = vpop.xlane.xlu0 %786
    %v788 = vsub.f32 %v772, %v778
    %v789 = vsub.f32 %v773, %v781
    %v790 = vsub.f32 %v774, %v784
    %v791 = vsub.f32 %v775, %v787
    %v792 = vmul.f32 %v788, 1.442695
    %v793 = vpow.pop %v792
    %v794 = vmul.f32 %v789, 1.442695
    %v795 = vpow.pop %v794
    %v796 = vmul.f32 %v790, 1.442695
    %v797 = vpow.pop %v796
    %v798 = vmul.f32 %v791, 1.442695
    %v799 = vpow.pop %v798
    %v800 = vsel %vm195, %v793, 0.0
    %801 = vadd.xlane.f32.xlu0 %v800
    %v802 = vpop.xlane.xlu0 %801
    %v803 = vsel %vm195, %v795, 0.0
    %804 = vadd.xlane.f32.xlu0 %v803
    %v805 = vpop.xlane.xlu0 %804
    %v806 = vsel %vm195, %v797, 0.0
    %807 = vadd.xlane.f32.xlu0 %v806
    %v808 = vpop.xlane.xlu0 %807
    %v809 = vsel %vm195, %v799, 0.0
    %810 = vadd.xlane.f32.xlu0 %v809
    %v811 = vpop.xlane.xlu0 %810
    %v812 = vrcp.pop %v802
    %v813 = vrcp.pop %v805
    %v814 = vrcp.pop %v808
    %v815 = vrcp.pop %v811
    %v816 = vmul.f32 %v793, %v812
    %v817 = vmul.f32 %v795, %v813
    %v818 = vmul.f32 %v797, %v814
    %v819 = vmul.f32 %v799, %v815
    %v820 = vpack.c.bf16 %v817, %v816
    %v821 = vpack.c.bf16 %v819, %v818
    %v822 = vpack.c.bf16 %v720, %v693
    %v823 = vpack.c.bf16 %v727, %v724
    %826 = vrot.lane.b32.xlu0 %v822, 64
    %v827 = vpop.permute.xlu0 %826
    %828 = vrot.lane.b32.xlu0 %v823, 64
    %v829 = vpop.permute.xlu0 %828
    %v833 = vsel %vm195, %v820, 0
    %v836 = vsel %vm195, %v821, 0
    %838 = vmatpush.bf16.msra.mxu0 0
    %839 = vmatpush.bf16.msra.mxu0 0
    %840 = vmatpush.bf16.msra.mxu0 0
    %841 = vmatpush.bf16.msra.mxu0 0
    %842 = vmatpush.bf16.msra.mxu0 0
    %843 = vmatpush.bf16.msra.mxu0 0
    %844 = vmatpush.bf16.msra.mxu0 %v829
    %845 = vmatpush.bf16.msra.mxu0 %v827
    %846 = vmatmul.bf16.gmra.mxu0 %v833
    %v847 = vpop.f32.mrf.mxu0
    %v848 = vadd.f32 0.0, %v847
    %v849 = vpop.f32.mrf.mxu0
    %v850 = vadd.f32 0.0, %v849
    %851 = vmatmul.bf16.gmra.mxu0 %v836
    %v852 = vpop.f32.mrf.mxu0
    %v853 = vadd.f32 0.0, %v852
    %v854 = vpop.f32.mrf.mxu0
    %v855 = vadd.f32 0.0, %v854
    %856 = vdwg.mxu0
    %v857 = vadd.f32 %v848, %v850
    %v858 = vadd.f32 %v857, %v853
    %v859 = vadd.f32 %v858, %v855
    %v860 = vadd.f32 %v617, %v859
    %v861 = vperm.slane %v27, 3
    %v862 = vadd.f32 %v860, %v861
    %v863 = vsel %vm195, %v862, 0.0
    %864 = vadd.xlane.f32.xlu0 %v863
    %v865 = vpop.xlane.xlu0 %864
    %v866 = vmul.f32 %v865, %v205
    %v867 = vmul.f32 %v862, %v862
    %v868 = vsel %vm195, %v867, 0.0
    %869 = vadd.xlane.f32.xlu0 %v868
    %v870 = vpop.xlane.xlu0 %869
    %v871 = vmul.f32 %v870, %v205
    %v872 = vmul.f32 %v866, %v866
    %v873 = vsub.f32 %v871, %v872
    %v874 = vsub.f32 %v862, %v866
    %v875 = vadd.f32 %v873, 1e-05
    %v876 = vrsqrt.pop %v875
    %v877 = vmul.f32 %v876, %v875
    %v878 = vmul.f32 %v877, %v876
    %v879 = vmul.f32 0.5, %v878
    %v880 = vsub.f32 1.5, %v879
    %v881 = vmul.f32 %v876, %v880
    %vm882 = vweird.f32 %v875
    %vm883 = vweird.f32 %v876
    %vm884 = vmor %vm882, %vm883
    %v885 = vsel %vm884, %v876, %v881
    %v886 = vmul.f32 %v874, %v885
    %v887 = vperm.slane %v27, 4
    %v888 = vmul.f32 %v886, %v887
    %v889 = vperm.slane %v27, 5
    %v890 = vadd.f32 %v888, %v889
    %v891 = vpack.c.bf16 %v890, %v890
    %v892 = vperm.slane %v27, 7
    %v893 = vunpack.c.l.b16 %v619
    %v894 = vunpack.c.l.b16 %v621
    %v895 = vunpack.c.l.b16 %v623
    %v896 = vunpack.c.l.b16 %v625
    %v897 = vpack.c.b16 %v894, %v893
    %v898 = vpack.c.b16 %v896, %v895
    %v902 = vsel %vm195, %v891, 0
    %904 = vmatpush.bf16.msra.mxu0 0
    %905 = vmatpush.bf16.msra.mxu0 0
    %906 = vmatpush.bf16.msra.mxu0 0
    %907 = vmatpush.bf16.msra.mxu0 0
    %908 = vmatpush.bf16.msra.mxu0 0
    %909 = vmatpush.bf16.msra.mxu0 0
    %910 = vmatpush.bf16.msra.mxu0 %v898
    %911 = vmatpush.bf16.msra.mxu0 %v897
    %912 = vmatmul.bf16.gmra.mxu0 %v902
    %v913 = vpop.f32.mrf.mxu0
    %v914 = vadd.f32 %v892, %v913
    %v915 = vpop.f32.mrf.mxu0
    %916 = vdwg.mxu0
    %v917 = vmul.f32 %v914, 0.5
    %v918 = vmul.f32 %v914, 0.70710677
    %v919 = vmul.f32 %v918, %v918
    %v920 = vmin.f32 16.0, %v919
    %v921 = vmul.f32 %v920, 2.1237322e-06
    %v922 = vadd.f32 %v921, 0.00028619796
    %v923 = vmul.f32 %v920, %v922
    %v924 = vadd.f32 %v923, 0.0036580483
    %v925 = vmul.f32 %v920, %v924
    %v926 = vadd.f32 %v925, 0.05243302
    %v927 = vmul.f32 %v920, %v926
    %v928 = vadd.f32 %v927, 0.18741608
    %v929 = vmul.f32 %v920, %v928
    %v930 = vadd.f32 %v929, 1.1283791
    %v931 = vmul.f32 %v918, %v930
    %v932 = vmul.f32 %v920, 3.8918573e-05
    %v933 = vadd.f32 %v932, 0.001143296
    %v934 = vmul.f32 %v920, %v933
    %v935 = vadd.f32 %v934, 0.014752088
    %v936 = vmul.f32 %v920, %v935
    %v937 = vadd.f32 %v936, 0.112945676
    %v938 = vmul.f32 %v920, %v937
    %v939 = vadd.f32 %v938, 0.4994258
    %v940 = vmul.f32 %v920, %v939
    %v941 = vadd.f32 %v940, 1.0
    %v942 = vrcp.pop %v941
    %v943 = vmul.f32 %v941, %v942
    %v944 = vsub.f32 1.0, %v943
    %v945 = vmul.f32 %v942, %v944
    %v946 = vadd.f32 %v942, %v945
    %vm947 = vweird.f32 %v941
    %vm948 = vweird.f32 %v942
    %vm949 = vmor %vm947, %vm948
    %v950 = vsel %vm949, %v942, %v946
    %v951 = vand.u32 2147483647, %v941
    %vm952 = vcmp.eq.f32.partialorder %v951, 8.507059e+37
    %v953 = vand.u32 %v941, 2147483648
    %v954 = vor.u32 1.1754944e-38, %v953
    %v955 = vsel %vm952, %v954, %v950
    %v956 = vmul.f32 %v931, %v955
    %v957 = vmin.f32 %v956, 1.0
    %v958 = vmax.f32 %v957, -1.0
    %v959 = vadd.f32 %v958, 1.0
    %v960 = vmul.f32 %v917, %v959
    %s961 = scalar_lea.vmem %s3, 64
    %v962 = vld [vmem:[%s961] sm:$0xf]
    %v963 = vld [vmem:[%s961 + $0x4] sm:$0xf]
    %v964 = vld [vmem:[%s961 + $0x8] sm:$0xf]
    %v965 = vld [vmem:[%s961 + $0xc] sm:$0xf]
    %v966 = vld [vmem:[%s961 + $0x10] sm:$0xf]
    %v967 = vld [vmem:[%s961 + $0x14] sm:$0xf]
    %v968 = vld [vmem:[%s961 + $0x18] sm:$0xf]
    %v969 = vld [vmem:[%s961 + $0x1c] sm:$0xf]
    %v970 = vld [vmem:[%s961 + $0x20] sm:$0xf]
    %v971 = vld [vmem:[%s961 + $0x24] sm:$0xf]
    %v972 = vld [vmem:[%s961 + $0x28] sm:$0xf]
    %v973 = vld [vmem:[%s961 + $0x2c] sm:$0xf]
    %v974 = vld [vmem:[%s961 + $0x30] sm:$0xf]
    %v975 = vld [vmem:[%s961 + $0x34] sm:$0xf]
    %v976 = vld [vmem:[%s961 + $0x38] sm:$0xf]
    %v977 = vld [vmem:[%s961 + $0x3c] sm:$0xf]
    %v978 = vpack.c.bf16 %v960, %v960
    %v979 = vperm.slane %v27, 6
    %v996 = vunpack.c.l.b16 %v962
    %v997 = vunpack.c.l.b16 %v963
    %v998 = vunpack.c.l.b16 %v964
    %v999 = vunpack.c.l.b16 %v965
    %v1000 = vunpack.c.l.b16 %v966
    %v1001 = vunpack.c.l.b16 %v967
    %v1002 = vunpack.c.l.b16 %v968
    %v1003 = vunpack.c.l.b16 %v969
    %v1004 = vunpack.c.l.b16 %v970
    %v1005 = vunpack.c.l.b16 %v971
    %v1006 = vunpack.c.l.b16 %v972
    %v1007 = vunpack.c.l.b16 %v973
    %v1008 = vunpack.c.l.b16 %v974
    %v1009 = vunpack.c.l.b16 %v975
    %v1010 = vunpack.c.l.b16 %v976
    %v1011 = vunpack.c.l.b16 %v977
    %v1012 = vpack.c.b16 %v997, %v996
    %v1013 = vpack.c.b16 %v999, %v998
    %v1014 = vpack.c.b16 %v1001, %v1000
    %v1015 = vpack.c.b16 %v1003, %v1002
    %v1016 = vpack.c.b16 %v1005, %v1004
    %v1017 = vpack.c.b16 %v1007, %v1006
    %v1018 = vpack.c.b16 %v1009, %v1008
    %v1019 = vpack.c.b16 %v1011, %v1010
    %1028 = vmatpush.bf16.msra.mxu0 %v1019
    %1029 = vmatpush.bf16.msra.mxu0 %v1018
    %1030 = vmatpush.bf16.msra.mxu0 %v1017
    %1031 = vmatpush.bf16.msra.mxu0 %v1016
    %1032 = vmatpush.bf16.msra.mxu0 %v1015
    %1033 = vmatpush.bf16.msra.mxu0 %v1014
    %1034 = vmatpush.bf16.msra.mxu0 %v1013
    %1035 = vmatpush.bf16.msra.mxu0 %v1012
    %1036 = vmatmul.bf16.gmra.mxu0 %v978
    %v1037 = vpop.f32.mrf.mxu0
    %v1038 = vadd.f32 %v979, %v1037
    %v1039 = vpop.f32.mrf.mxu0
    %1040 = vdwg.mxu0
    %v1041 = vadd.f32 %v862, %v1038
    %v1042 = vsel %vm195, %v1041, 0.0
    %1043 = vadd.xlane.f32.xlu0 %v1042
    %v1044 = vpop.xlane.xlu0 %1043
    %v1045 = vmul.f32 %v1044, %v205
    %v1046 = vmul.f32 %v1041, %v1041
    %v1047 = vsel %vm195, %v1046, 0.0
    %1048 = vadd.xlane.f32.xlu0 %v1047
    %v1049 = vpop.xlane.xlu0 %1048
    %v1050 = vmul.f32 %v1049, %v205
    %v1051 = vmul.f32 %v1045, %v1045
    %v1052 = vsub.f32 %v1050, %v1051
    %v1053 = vsub.f32 %v1041, %v1045
    %v1054 = vadd.f32 %v1052, 1e-05
    %v1055 = vrsqrt.pop %v1054
    %v1056 = vmul.f32 %v1055, %v1054
    %v1057 = vmul.f32 %v1056, %v1055
    %v1058 = vmul.f32 0.5, %v1057
    %v1059 = vsub.f32 1.5, %v1058
    %v1060 = vmul.f32 %v1055, %v1059
    %vm1061 = vweird.f32 %v1054
    %vm1062 = vweird.f32 %v1055
    %vm1063 = vmor %vm1061, %vm1062
    %v1064 = vsel %vm1063, %v1055, %v1060
    %v1065 = vmul.f32 %v1053, %v1064
    %s1066 = scalar_lea.vmem %s2, 96
    %v1067 = vld [vmem:[%s1066] sm:$0xff]
    %v1068 = vld [vmem:[%s1066 + $0xc] sm:$0xff]
    %v1069 = vld [vmem:[%s1066 + $0x18] sm:$0xff]
    %v1070 = vld [vmem:[%s1066 + $0x24] sm:$0xff]
    %v1071 = vpack.c.bf16 %v1065, %v1065
    %v1072 = vperm.slane %v26, 1
    %v1077 = vunpack.c.l.b16 %v1067
    %v1078 = vunpack.c.l.b16 %v1068
    %v1079 = vunpack.c.l.b16 %v1069
    %v1080 = vunpack.c.l.b16 %v1070
    %v1081 = vpack.c.b16 %v1078, %v1077
    %v1082 = vpack.c.b16 %v1080, %v1079
    %v1086 = vsel %vm195, %v1071, 0
    %1088 = vmatpush.bf16.msra.mxu0 0
    %1089 = vmatpush.bf16.msra.mxu0 0
    %1090 = vmatpush.bf16.msra.mxu0 0
    %1091 = vmatpush.bf16.msra.mxu0 0
    %1092 = vmatpush.bf16.msra.mxu0 0
    %1093 = vmatpush.bf16.msra.mxu0 0
    %1094 = vmatpush.bf16.msra.mxu0 %v1082
    %1095 = vmatpush.bf16.msra.mxu0 %v1081
    %1096 = vmatmul.bf16.gmra.mxu0 %v1086
    %v1097 = vpop.f32.mrf.mxu0
    %v1098 = vadd.f32 %v1072, %v1097
    %v1099 = vpop.f32.mrf.mxu0
    %1100 = vdwg.mxu0
    %1101 = vst [vmem:[#allocation2] sm:$0xff] %v1098
    // Predicated region
    $region22: #{tpu_custom_call.1} parent=1 // pred_check
      _
    $region23: #{tpu_custom_call.1} parent=1 // pred_check_branch
      %1103 = sbr.rel (0) target = $region25
    $region24: #{tpu_custom_call.1} parent=1 // pred_region
      %1105 = vsyncadd [#allocation3], 0
      %s1107 = sshll.u32 [#allocation2], 4
      %s1108 = int_to_ptr.vmem [resolvable:$true] %s1107
      %s1109 = sshll.u32 %s5, 4
      %s1110 = int_to_ptr.hbm [resolvable:$true] %s1109
      %1112 = dma.vmem_to_hbm [thread:$0]  %s1108, 128, %s1110, [#allocation3]
    $region25: #{tpu_custom_call.1} parent=1 // pred_fallthru
      _
    // Predicated region
    $region26: #{tpu_custom_call.1} parent=1 // pred_check
      _
    $region27: #{tpu_custom_call.1} parent=1 // pred_check_branch
      %1114 = sbr.rel (0) target = $region29
    $region28: #{tpu_custom_call.1} parent=1 // pred_region
      %1116 = dma.done [#allocation3], 128
    $region29: #{tpu_custom_call.1} parent=1 // pred_fallthru
      _
    %1117 = vsyncpa [#allocation3], 1

</llo_original>
